<compile_context>
chip_gen: v7x
topology: tpu7x:2x2x1
jax: 0.10.0
libtpu: 0.0.40
codegen_flags: <defaults>
</compile_context>

<pallas_src>
import jax
import jax.numpy as jnp
from jax import lax
from jax.experimental import pallas as pl
from jax.experimental.pallas import tpu as pltpu

_EPS = 1e-5
_LANE = 128

_VMEM_LIMIT_CACHE = None


def _vmem_limit_bytes():
    """VMEM budget with headroom, derived from the actual chip when possible."""
    global _VMEM_LIMIT_CACHE
    if _VMEM_LIMIT_CACHE is None:
        try:
            cap = int(pltpu.get_tpu_info().vmem_capacity_bytes)
        except Exception:
            cap = 128 * 1024 * 1024
        # 3/4 of physical (=> ~48 MiB on v7x, 96 MiB on v5e/v6e), capped.
        _VMEM_LIMIT_CACHE = min(cap * 3 // 4, 112 * 1024 * 1024)
    return _VMEM_LIMIT_CACHE


def _round_up(x, m):
    return (x + m - 1) // m * m


def _pick_tile(total, maximum):
    """Largest multiple of 128 that divides `total` (a multiple of 128) and is
    <= maximum."""
    t = min(total, maximum)
    while total % t:
        t -= _LANE
    return t


# ----------------------------- Pallas kernels --------------------------------

def _stats_kernel(x_ref, sum_ref, sq_ref):
    """Per-row-tile partial per-channel sum / sum-of-squares (no cross-step
    accumulation -> the single grid axis is fully 'parallel')."""
    x = x_ref[...]
    sum_ref[...] = jnp.sum(x, axis=0).reshape(1, 1, -1)
    sq_ref[...] = jnp.sum(x * x, axis=0).reshape(1, 1, -1)


def channel_stats(x2d):
    """Per-channel (sum, sum_sq) of an (M, C) f32 array (C multiple of 128)."""
    M, C = x2d.shape
    tm = min(512, _round_up(M, 8))
    Mp = _round_up(M, tm)
    if Mp != M:
        x2d = jnp.pad(x2d, ((0, Mp - M), (0, 0)))   # zero rows don't change sums
    nt = Mp // tm
    s, q = pl.pallas_call(
        _stats_kernel,
        grid_spec=pltpu.PrefetchScalarGridSpec(
            num_scalar_prefetch=0,
            grid=(nt,),
            in_specs=[pl.BlockSpec((tm, C), lambda i: (i, 0))],
            out_specs=[pl.BlockSpec((1, 1, C), lambda i: (i, 0, 0)),
                       pl.BlockSpec((1, 1, C), lambda i: (i, 0, 0))]),
        out_shape=[jax.ShapeDtypeStruct((nt, 1, C), jnp.float32),
                   jax.ShapeDtypeStruct((nt, 1, C), jnp.float32)],
        compiler_params=pltpu.CompilerParams(
            dimension_semantics=("parallel",),
            vmem_limit_bytes=_vmem_limit_bytes()),
    )(x2d)
    return jnp.sum(s, axis=(0, 1)), jnp.sum(q, axis=(0, 1))


def _make_conv_gemm_kernel(has_residual, has_shortcut):
    """GEMM kernel: out = A @ W (+ residual), optional shortcut = A @ Wsc,
    plus per-tile partial (sum, sum_sq) of the output for the next BN."""

    def kernel(*refs):
        it = iter(refs)
        a_ref = next(it)                                  # (TM, TK)
        w_ref = next(it)                                  # (TK, TC)
        r_ref = next(it) if has_residual else None        # (TM, TC) f32
        wsc_ref = next(it) if has_shortcut else None      # (TK, TC)
        out_ref = next(it)                                # (TM, TC) f32
        res_ref = next(it) if has_shortcut else None      # (TM, TC) f32
        sum_ref = next(it)                                # (1, 1, TC) f32
        sq_ref = next(it)                                 # (1, 1, TC) f32
        acc_ref = next(it)                                # VMEM (TM, TC) f32
        acc2_ref = next(it) if has_shortcut else None     # VMEM (TM, TC) f32

        k = pl.program_id(2)

        @pl.when(k == 0)
        def _():
            if has_residual:
                acc_ref[...] = r_ref[...]                 # fused residual add
            else:
                acc_ref[...] = jnp.zeros_like(acc_ref)
            if has_shortcut:
                acc2_ref[...] = jnp.zeros_like(acc2_ref)

        a = a_ref[...]
        acc_ref[...] += jnp.dot(a, w_ref[...],
                                preferred_element_type=jnp.float32)
        if has_shortcut:
            acc2_ref[...] += jnp.dot(a, wsc_ref[...],
                                     preferred_element_type=jnp.float32)

        @pl.when(k == pl.num_programs(2) - 1)
        def _():
            h = acc_ref[...]
            out_ref[...] = h
            # partial batch statistics of this conv's output (feeds next BN)
            sum_ref[...] = jnp.sum(h, axis=0).reshape(1, 1, -1)
            sq_ref[...] = jnp.sum(h * h, axis=0).reshape(1, 1, -1)
            if has_shortcut:
                res_ref[...] = acc2_ref[...]

    return kernel


def conv_gemm(a, w, *, residual=None, shortcut_w=None):
    """Tiled GEMM for one 3x3 conv in K-packed patch form.

    a        : (Mp, Kp)  bf16/f32 patch matrix (M = N*Ho*Wo output positions)
    w        : (Kp, Cp)  packed 3x3 weights
    residual : (Mp, Cp)  f32, added into the accumulator (conv2)
    shortcut_w: (Kp, Cp) 1x1-shortcut weights embedded at the centre-tap rows
    Returns h (+ res if shortcut) and the per-channel (sum, sum_sq) of h.
    """
    Mp, Kp = a.shape
    _, Cp = w.shape
    TM = _pick_tile(Mp, 512)
    TK = _pick_tile(Kp, 512)
    TC = _pick_tile(Cp, 256)
    gm, gj, gk = Mp // TM, Cp // TC, Kp // TK
    has_res = residual is not None
    has_sc = shortcut_w is not None

    in_specs = [pl.BlockSpec((TM, TK), lambda m, j, k: (m, k)),
                pl.BlockSpec((TK, TC), lambda m, j, k: (k, j))]
    args = [a, w]
    if has_res:
        in_specs.append(pl.BlockSpec((TM, TC), lambda m, j, k: (m, j)))
        args.append(residual)
    if has_sc:
        in_specs.append(pl.BlockSpec((TK, TC), lambda m, j, k: (k, j)))
        args.append(shortcut_w)

    out_shape = [jax.ShapeDtypeStruct((Mp, Cp), jnp.float32)]
    out_specs = [pl.BlockSpec((TM, TC), lambda m, j, k: (m, j))]
    if has_sc:
        out_shape.append(jax.ShapeDtypeStruct((Mp, Cp), jnp.float32))
        out_specs.append(pl.BlockSpec((TM, TC), lambda m, j, k: (m, j)))
    # per-(m-tile, c-tile) stat partials -> no cross-iteration accumulator, so
    # the m and j axes can stay "parallel" (v7x two TensorCores).
    out_shape += [jax.ShapeDtypeStruct((gm, 1, Cp), jnp.float32)] * 2
    out_specs += [pl.BlockSpec((1, 1, TC), lambda m, j, k: (m, 0, j))] * 2

    scratch = [pltpu.VMEM((TM, TC), jnp.float32)]
    if has_sc:
        scratch.append(pltpu.VMEM((TM, TC), jnp.float32))

    outs = pl.pallas_call(
        _make_conv_gemm_kernel(has_res, has_sc),
        grid_spec=pltpu.PrefetchScalarGridSpec(
            num_scalar_prefetch=0,
            grid=(gm, gj, gk),
            in_specs=in_specs,
            out_specs=out_specs,
            scratch_shapes=scratch),
        out_shape=out_shape,
        compiler_params=pltpu.CompilerParams(
            dimension_semantics=("parallel", "parallel", "arbitrary"),
            vmem_limit_bytes=_vmem_limit_bytes()),
    )(*args)

    if has_sc:
        h, res, s, q = outs
    else:
        h, s, q = outs
    s = jnp.sum(s, axis=(0, 1))
    q = jnp.sum(q, axis=(0, 1))
    return (h, res, s, q) if has_sc else (h, s, q)


# ------------------------------ JAX glue --------------------------------------

def _bn_affine(ssum, ssq, count, gamma, beta):
    """Train-mode BatchNorm affine (scale, shift) from per-channel sums."""
    c = gamma.shape[0]
    mean = ssum[:c] / count
    var = jnp.maximum(ssq[:c] / count - mean * mean, 0.0)
    inv = lax.rsqrt(var + _EPS)
    scale = gamma * inv
    shift = beta - mean * scale
    return scale, shift


def _bn_relu_patches(x, scale, shift, stride):
    """relu(x*scale+shift), conv pad=1, 3x3/stride patch extraction with the 9
    taps packed into the GEMM K dim (tap-major, channel-minor).  XLA fuses the
    normalize+relu+pad+gather into one small op over the raw-channel array, so
    BN+ReLU is computed exactly once per input element."""
    N, H, W, C = x.shape
    a = jnp.maximum(x * scale + shift, 0.0)
    Ho = (H - 1) // stride + 1
    Wo = (W - 1) // stride + 1
    ap = jnp.pad(a, ((0, 0), (1, 1), (1, 1), (0, 0)))
    taps = [ap[:, dy:dy + (Ho - 1) * stride + 1:stride,
                  dx:dx + (Wo - 1) * stride + 1:stride, :]
            for dy in range(3) for dx in range(3)]
    patches = jnp.stack(taps, axis=3)                 # (N, Ho, Wo, 9, C)
    return patches.reshape(N * Ho * Wo, 9 * C), Ho, Wo


def _pad2d(x, rows, cols, dtype):
    r, c = x.shape
    return jnp.pad(x, ((0, rows - r), (0, cols - c))).astype(dtype)


def _pack_conv_w(w, k_pad, c_pad, dtype):
    kh, kw, ci, co = w.shape
    return _pad2d(w.reshape(kh * kw * ci, co), k_pad, c_pad, dtype)


def _pack_shortcut_w(wsc, cin, k_pad, c_pad, dtype):
    """1x1/stride-s shortcut conv == GEMM against the centre tap (tap index 4)
    of the packed 3x3 patches; embed its weights at K rows [4*cin, 5*cin)."""
    co = wsc.shape[1]
    w = jnp.zeros((k_pad, c_pad), jnp.float32)
    w = w.at[4 * cin:5 * cin, :co].set(wsc)
    return w.astype(dtype)


def basic_block_fwd(x, in_stats, p, stride, compute_dtype):
    """Pre-activation basic block on NHWC input `x` (real channels).
    `in_stats` = (sum, sum_sq, count) of `x` per channel."""
    N, H, W, Cin = x.shape
    Cout = p["conv1_w"].shape[-1]
    Cout_p = _round_up(Cout, _LANE)

    # BN1 (batch stats) + ReLU + K-packed patches, then conv1 as one GEMM with
    # the 1x1 shortcut fused as a second GEMM on the same A tile.
    sc1, sh1 = _bn_affine(*in_stats, p["bn1_gamma"], p["bn1_beta"])
    A1, Ho, Wo = _bn_relu_patches(x, sc1, sh1, stride)
    M = N * Ho * Wo
    Mp = _round_up(M, _LANE)
    K1p = _round_up(9 * Cin, _LANE)
    A1 = _pad2d(A1, Mp, K1p, compute_dtype)
    W1 = _pack_conv_w(p["conv1_w"], K1p, Cout_p, compute_dtype)

    if p["shortcut_w"] is not None:
        Wsc = _pack_shortcut_w(p["shortcut_w"], Cin, K1p, Cout_p, compute_dtype)
        h1, res, s1, q1 = conv_gemm(A1, W1, shortcut_w=Wsc)
    else:
        h1, s1, q1 = conv_gemm(A1, W1)
        # identity shortcut (Cin == Cout, stride == 1): raw block input in the
        # GEMM (M, Cout_p) layout.
        res = _pad2d(x.reshape(N * H * W, Cin), Mp, Cout_p, jnp.float32)

    # BN2 from the stats emitted by conv1's kernel, then conv2 as one GEMM with
    # the residual add and the next BN's stats fused in-kernel.
    sc2, sh2 = _bn_affine(s1, q1, M, p["bn2_gamma"], p["bn2_beta"])
    h1_nhwc = h1[:M, :Cout].reshape(N, Ho, Wo, Cout)
    A2, _, _ = _bn_relu_patches(h1_nhwc, sc2, sh2, 1)
    K2p = _round_up(9 * Cout, _LANE)
    A2 = _pad2d(A2, Mp, K2p, compute_dtype)
    W2 = _pack_conv_w(p["conv2_w"], K2p, Cout_p, compute_dtype)

    out, so, qo = conv_gemm(A2, W2, residual=res)
    out_nhwc = out[:M, :Cout].reshape(N, Ho, Wo, Cout)
    return out_nhwc, (so, qo, M)


def network_block_forward(x_nchw, params, stride, compute_dtype=jnp.bfloat16):
    """NetworkBlock.forward: input/output NCHW like the PyTorch module."""
    x = jnp.transpose(x_nchw, (0, 2, 3, 1)).astype(jnp.float32)   # NCHW -> NHWC
    N, H, W, Cin = x.shape
    Cin_p = _round_up(Cin, _LANE)

    # batch stats of the NetworkBlock input (Pallas tiled reduction); every
    # later BN's stats are emitted for free by the conv GEMM kernels.
    x2d = jnp.pad(x.reshape(N * H * W, Cin), ((0, 0), (0, Cin_p - Cin)))
    s0, q0 = channel_stats(x2d)
    stats = (s0, q0, N * H * W)

    for i, p in enumerate(params):
        x, stats = basic_block_fwd(x, stats, p, stride if i == 0 else 1,
                                   compute_dtype)

    return jnp.transpose(x, (0, 3, 1, 2))                          # NHWC -> NCHW


# ------------------------- deterministic parameter init ----------------------

def init_network_block(key, in_planes, out_planes, blocks, stride):
    del stride  # stride is passed (static) to the forward, not stored in params
    params = []
    for i in range(blocks):
        cin = in_planes if i == 0 else out_planes
        key, k1, k2, k3 = jax.random.split(key, 4)
        w1 = jax.random.normal(k1, (3, 3, cin, out_planes),
                               jnp.float32) * (2.0 / (9 * cin)) ** 0.5
        w2 = jax.random.normal(k2, (3, 3, out_planes, out_planes),
                               jnp.float32) * (2.0 / (9 * out_planes)) ** 0.5
        sc = (jax.random.normal(k3, (cin, out_planes),
                                jnp.float32) * (2.0 / cin) ** 0.5) if i == 0 else None
        params.append(dict(
            conv1_w=w1, conv2_w=w2, shortcut_w=sc,
            bn1_gamma=jnp.ones((cin,), jnp.float32),
            bn1_beta=jnp.zeros((cin,), jnp.float32),
            bn2_gamma=jnp.ones((out_planes,), jnp.float32),
            bn2_beta=jnp.zeros((out_planes,), jnp.float32),
        ))
    return params


# ------------------------------- reference -----------------------------------

def _reference_forward(x_nchw, params, stride):
    """Pure-JAX (XLA) reference for correctness checking."""
    x = jnp.transpose(x_nchw, (0, 2, 3, 1)).astype(jnp.float32)

    def bn_relu(t, g, b):
        m = jnp.mean(t, axis=(0, 1, 2))
        v = jnp.mean(jnp.square(t - m), axis=(0, 1, 2))
        return jnp.maximum((t - m) * lax.rsqrt(v + _EPS) * g + b, 0.0)

    def conv(t, w, s, pad):
        return lax.conv_general_dilated(
            t, w, (s, s), ((pad, pad), (pad, pad)),
            dimension_numbers=("NHWC", "HWIO", "NHWC"))

    for i, p in enumerate(params):
        s = stride if i == 0 else 1
        a = bn_relu(x, p["bn1_gamma"], p["bn1_beta"])
        h = conv(a, p["conv1_w"], s, 1)
        hb = bn_relu(h, p["bn2_gamma"], p["bn2_beta"])
        h2 = conv(hb, p["conv2_w"], 1, 1)
        res = x if p["shortcut_w"] is None else conv(a, p["shortcut_w"][None, None], s, 0)
        x = h2 + res
    return jnp.transpose(x, (0, 3, 1, 2))


# ---------------------------------- main --------------------------------------

if __name__ == "__main__":
    key = jax.random.PRNGKey(0)
    key, kx = jax.random.split(key)

    # NetworkBlock(block, in_planes=4, out_planes=8, blocks=2, start_num=0, stride=2)
    in_planes, out_planes, blocks, stride = 4, 8, 2, 2
    params = init_network_block(key, in_planes, out_planes, blocks, stride)
    x = jax.random.normal(kx, (2, in_planes, 16, 16), jnp.float32)   # NCHW

    fwd = jax.jit(network_block_forward, static_argnums=(2, 3))
    ref = jax.block_until_ready(_reference_forward(x, params, stride))

    # f32 MXU operands: tight check of the kernel structure against XLA.
    out_f32 = jax.block_until_ready(fwd(x, params, stride, jnp.float32))
    assert out_f32.shape == (2, out_planes, 16 // stride, 16 // stride), out_f32.shape
    assert bool(jnp.all(jnp.isfinite(out_f32)))
    assert bool(jnp.allclose(out_f32, ref, atol=2e-3, rtol=2e-3)), \
        float(jnp.max(jnp.abs(out_f32 - ref)))

    # bf16 MXU operands (the fast path on v5e/v6e/v7x), f32 accumulation.
    # Tolerance reflects bf16 input rounding through 2 cascaded blocks.
    out_bf16 = jax.block_until_ready(fwd(x, params, stride, jnp.bfloat16))
    assert out_bf16.shape == out_f32.shape
    assert bool(jnp.all(jnp.isfinite(out_bf16)))
    assert bool(jnp.allclose(out_bf16, ref, atol=8e-2, rtol=5e-2)), \
        float(jnp.max(jnp.abs(out_bf16 - ref)))
    rel = float(jnp.linalg.norm(out_bf16 - ref) / jnp.linalg.norm(ref))
    assert rel < 2e-2, rel

    print("KERNEL_OK")
</pallas_src>

<mosaic_0001>
module attributes {stable_mosaic.version = 11 : i64} {
  func.func @_stats_kernel(%arg0: i32, %arg1: memref<512x128xf32, #tpu.memory_space<vmem>>, %arg2: memref<1x1x128xf32, #tpu.memory_space<vmem>>, %arg3: memref<1x1x128xf32, #tpu.memory_space<vmem>>) attributes {dimension_semantics = [#tpu.dimension_semantics<parallel>], iteration_bounds = array<i64: 1>, scalar_prefetch = 0 : i64, scratch_operands = 0 : i64, tpu.core_type = #tpu.core_type<tc>, window_params = [{transform_indices = @transform_0, window_bounds = array<i64: 512, 128>}, {transform_indices = @transform_1, window_bounds = array<i64: 1, 1, 128>}, {transform_indices = @transform_2, window_bounds = array<i64: 1, 1, 128>}]} {
    %c0 = arith.constant 0 : index
    %c0_0 = arith.constant 0 : index
    %0 = vector.load %arg1[%c0, %c0_0] : memref<512x128xf32, #tpu.memory_space<vmem>>, vector<512x128xf32>
    %cst = arith.constant dense<0.000000e+00> : vector<128xf32>
    %1 = vector.multi_reduction <add>, %0, %cst [0] : vector<512x128xf32> to vector<128xf32>
    %2 = vector.shape_cast %1 : vector<128xf32> to vector<1x1x128xf32>
    %c0_1 = arith.constant 0 : index
    %c0_2 = arith.constant 0 : index
    %c0_3 = arith.constant 0 : index
    %3 = vector.load %arg2[%c0_1, %c0_2, %c0_3] : memref<1x1x128xf32, #tpu.memory_space<vmem>>, vector<1x1x128xf32>
    tpu.vector_store %arg2[%c0_1, %c0_2, %c0_3], %2 {strides = array<i32>} : memref<1x1x128xf32, #tpu.memory_space<vmem>>, vector<1x1x128xf32>,
    %4 = arith.mulf %0, %0 : vector<512x128xf32>
    %cst_4 = arith.constant dense<0.000000e+00> : vector<128xf32>
    %5 = vector.multi_reduction <add>, %4, %cst_4 [0] : vector<512x128xf32> to vector<128xf32>
    %6 = vector.shape_cast %5 : vector<128xf32> to vector<1x1x128xf32>
    %c0_5 = arith.constant 0 : index
    %c0_6 = arith.constant 0 : index
    %c0_7 = arith.constant 0 : index
    %7 = vector.load %arg3[%c0_5, %c0_6, %c0_7] : memref<1x1x128xf32, #tpu.memory_space<vmem>>, vector<1x1x128xf32>
    tpu.vector_store %arg3[%c0_5, %c0_6, %c0_7], %6 {strides = array<i32>} : memref<1x1x128xf32, #tpu.memory_space<vmem>>, vector<1x1x128xf32>,
    return
  }
  func.func @transform_0(%arg0: i32) -> (i32, i32) {
    %c0_i32 = arith.constant 0 : i32
    %c0_i32_0 = arith.constant 0 : i32
    return %arg0, %c0_i32 : i32, i32
  }
  func.func @transform_1(%arg0: i32) -> (i32, i32, i32) {
    %c0_i32 = arith.constant 0 : i32
    %c0_i32_0 = arith.constant 0 : i32
    %c0_i32_1 = arith.constant 0 : i32
    return %arg0, %c0_i32, %c0_i32_0 : i32, i32, i32
  }
  func.func @transform_2(%arg0: i32) -> (i32, i32, i32) {
    %c0_i32 = arith.constant 0 : i32
    %c0_i32_0 = arith.constant 0 : i32
    %c0_i32_1 = arith.constant 0 : i32
    return %arg0, %c0_i32, %c0_i32_0 : i32, i32, i32
  }
}

module attributes {stable_mosaic.version = 11 : i64} {
  func.func @kernel(%arg0: i32, %arg1: i32, %arg2: i32, %arg3: memref<128x128xf32, #tpu.memory_space<vmem>>, %arg4: memref<128x128xf32, #tpu.memory_space<vmem>>, %arg5: memref<128x128xf32, #tpu.memory_space<vmem>>, %arg6: memref<128x128xf32, #tpu.memory_space<vmem>>, %arg7: memref<128x128xf32, #tpu.memory_space<vmem>>, %arg8: memref<1x1x128xf32, #tpu.memory_space<vmem>>, %arg9: memref<1x1x128xf32, #tpu.memory_space<vmem>>, %arg10: memref<128x128xf32, #tpu.memory_space<vmem>>, %arg11: memref<128x128xf32, #tpu.memory_space<vmem>>) attributes {dimension_semantics = [#tpu.dimension_semantics<parallel>, #tpu.dimension_semantics<parallel>, #tpu.dimension_semantics<arbitrary>], iteration_bounds = array<i64: 1, 1, 1>, scalar_prefetch = 0 : i64, scratch_operands = 2 : i64, tpu.core_type = #tpu.core_type<tc>, window_params = [{transform_indices = @transform_0, window_bounds = array<i64: 128, 128>}, {transform_indices = @transform_1, window_bounds = array<i64: 128, 128>}, {transform_indices = @transform_2, window_bounds = array<i64: 128, 128>}, {transform_indices = @transform_3, window_bounds = array<i64: 128, 128>}, {transform_indices = @transform_4, window_bounds = array<i64: 128, 128>}, {transform_indices = @transform_5, window_bounds = array<i64: 1, 1, 128>}, {transform_indices = @transform_6, window_bounds = array<i64: 1, 1, 128>}]} {
    %c0_i32 = arith.constant 0 : i32
    %0 = arith.cmpi eq, %arg2, %c0_i32 : i32
    %1 = arith.extui %0 : i1 to i32
    %c0_i32_0 = arith.constant 0 : i32
    %2 = arith.cmpi ne, %1, %c0_i32_0 : i32
    scf.if %2 {
      %cst_17 = arith.constant 0.000000e+00 : f32
      %17 = vector.broadcast %cst_17 : f32 to vector<128x128xf32>
      %c0_18 = arith.constant 0 : index
      %c0_19 = arith.constant 0 : index
      %18 = vector.load %arg10[%c0_18, %c0_19] : memref<128x128xf32, #tpu.memory_space<vmem>>, vector<128x128xf32>
      tpu.vector_store %arg10[%c0_18, %c0_19], %17 {strides = array<i32>} : memref<128x128xf32, #tpu.memory_space<vmem>>, vector<128x128xf32>,
      %cst_20 = arith.constant 0.000000e+00 : f32
      %19 = vector.broadcast %cst_20 : f32 to vector<128x128xf32>
      %c0_21 = arith.constant 0 : index
      %c0_22 = arith.constant 0 : index
      %20 = vector.load %arg11[%c0_21, %c0_22] : memref<128x128xf32, #tpu.memory_space<vmem>>, vector<128x128xf32>
      tpu.vector_store %arg11[%c0_21, %c0_22], %19 {strides = array<i32>} : memref<128x128xf32, #tpu.memory_space<vmem>>, vector<128x128xf32>,
    } else {
    }
    %c0 = arith.constant 0 : index
    %c0_1 = arith.constant 0 : index
    %3 = vector.load %arg3[%c0, %c0_1] : memref<128x128xf32, #tpu.memory_space<vmem>>, vector<128x128xf32>
    %c0_2 = arith.constant 0 : index
    %c0_3 = arith.constant 0 : index
    %4 = vector.load %arg10[%c0_2, %c0_3] : memref<128x128xf32, #tpu.memory_space<vmem>>, vector<128x128xf32>
    %c0_4 = arith.constant 0 : index
    %c0_5 = arith.constant 0 : index
    %5 = vector.load %arg4[%c0_4, %c0_5] : memref<128x128xf32, #tpu.memory_space<vmem>>, vector<128x128xf32>
    %cst = arith.constant dense<0.000000e+00> : vector<128x128xf32>
    %6 = tpu.matmul %3, %5, %cst {dimension_numbers = #tpu.dot_dimension_numbers<[1], [0], [0], [1], [0, 0, 1, 1], [], []>} : vector<128x128xf32>, vector<128x128xf32>, vector<128x128xf32> -> vector<128x128xf32>
    %7 = arith.addf %4, %6 : vector<128x128xf32>
    %c0_6 = arith.constant 0 : index
    %c0_7 = arith.constant 0 : index
    %8 = vector.load %arg10[%c0_6, %c0_7] : memref<128x128xf32, #tpu.memory_space<vmem>>, vector<128x128xf32>
    tpu.vector_store %arg10[%c0_6, %c0_7], %7 {strides = array<i32>} : memref<128x128xf32, #tpu.memory_space<vmem>>, vector<128x128xf32>,
    %c0_8 = arith.constant 0 : index
    %c0_9 = arith.constant 0 : index
    %9 = vector.load %arg11[%c0_8, %c0_9] : memref<128x128xf32, #tpu.memory_space<vmem>>, vector<128x128xf32>
    %c0_10 = arith.constant 0 : index
    %c0_11 = arith.constant 0 : index
    %10 = vector.load %arg5[%c0_10, %c0_11] : memref<128x128xf32, #tpu.memory_space<vmem>>, vector<128x128xf32>
    %cst_12 = arith.constant dense<0.000000e+00> : vector<128x128xf32>
    %11 = tpu.matmul %3, %10, %cst_12 {dimension_numbers = #tpu.dot_dimension_numbers<[1], [0], [0], [1], [0, 0, 1, 1], [], []>} : vector<128x128xf32>, vector<128x128xf32>, vector<128x128xf32> -> vector<128x128xf32>
    %12 = arith.addf %9, %11 : vector<128x128xf32>
    %c0_13 = arith.constant 0 : index
    %c0_14 = arith.constant 0 : index
    %13 = vector.load %arg11[%c0_13, %c0_14] : memref<128x128xf32, #tpu.memory_space<vmem>>, vector<128x128xf32>
    tpu.vector_store %arg11[%c0_13, %c0_14], %12 {strides = array<i32>} : memref<128x128xf32, #tpu.memory_space<vmem>>, vector<128x128xf32>,
    %c0_i32_15 = arith.constant 0 : i32
    %14 = arith.cmpi eq, %arg2, %c0_i32_15 : i32
    %15 = arith.extui %14 : i1 to i32
    %c0_i32_16 = arith.constant 0 : i32
    %16 = arith.cmpi ne, %15, %c0_i32_16 : i32
    scf.if %16 {
      %c0_17 = arith.constant 0 : index
      %c0_18 = arith.constant 0 : index
      %17 = vector.load %arg10[%c0_17, %c0_18] : memref<128x128xf32, #tpu.memory_space<vmem>>, vector<128x128xf32>
      %c0_19 = arith.constant 0 : index
      %c0_20 = arith.constant 0 : index
      %18 = vector.load %arg6[%c0_19, %c0_20] : memref<128x128xf32, #tpu.memory_space<vmem>>, vector<128x128xf32>
      tpu.vector_store %arg6[%c0_19, %c0_20], %17 {strides = array<i32>} : memref<128x128xf32, #tpu.memory_space<vmem>>, vector<128x128xf32>,
      %cst_21 = arith.constant dense<0.000000e+00> : vector<128xf32>
      %19 = vector.multi_reduction <add>, %17, %cst_21 [0] : vector<128x128xf32> to vector<128xf32>
      %20 = vector.shape_cast %19 : vector<128xf32> to vector<1x1x128xf32>
      %c0_22 = arith.constant 0 : index
      %c0_23 = arith.constant 0 : index
      %c0_24 = arith.constant 0 : index
      %21 = vector.load %arg8[%c0_22, %c0_23, %c0_24] : memref<1x1x128xf32, #tpu.memory_space<vmem>>, vector<1x1x128xf32>
      tpu.vector_store %arg8[%c0_22, %c0_23, %c0_24], %20 {strides = array<i32>} : memref<1x1x128xf32, #tpu.memory_space<vmem>>, vector<1x1x128xf32>,
      %22 = arith.mulf %17, %17 : vector<128x128xf32>
      %cst_25 = arith.constant dense<0.000000e+00> : vector<128xf32>
      %23 = vector.multi_reduction <add>, %22, %cst_25 [0] : vector<128x128xf32> to vector<128xf32>
      %24 = vector.shape_cast %23 : vector<128xf32> to vector<1x1x128xf32>
      %c0_26 = arith.constant 0 : index
      %c0_27 = arith.constant 0 : index
      %c0_28 = arith.constant 0 : index
      %25 = vector.load %arg9[%c0_26, %c0_27, %c0_28] : memref<1x1x128xf32, #tpu.memory_space<vmem>>, vector<1x1x128xf32>
      tpu.vector_store %arg9[%c0_26, %c0_27, %c0_28], %24 {strides = array<i32>} : memref<1x1x128xf32, #tpu.memory_space<vmem>>, vector<1x1x128xf32>,
      %c0_29 = arith.constant 0 : index
      %c0_30 = arith.constant 0 : index
      %26 = vector.load %arg11[%c0_29, %c0_30] : memref<128x128xf32, #tpu.memory_space<vmem>>, vector<128x128xf32>
      %c0_31 = arith.constant 0 : index
      %c0_32 = arith.constant 0 : index
      %27 = vector.load %arg7[%c0_31, %c0_32] : memref<128x128xf32, #tpu.memory_space<vmem>>, vector<128x128xf32>
      tpu.vector_store %arg7[%c0_31, %c0_32], %26 {strides = array<i32>} : memref<128x128xf32, #tpu.memory_space<vmem>>, vector<128x128xf32>,
    } else {
    }
    return
  }
  func.func @transform_0(%arg0: i32, %arg1: i32, %arg2: i32) -> (i32, i32) {
    %c0_i32 = arith.constant 0 : i32
    return %arg0, %arg2 : i32, i32
  }
  func.func @transform_1(%arg0: i32, %arg1: i32, %arg2: i32) -> (i32, i32) {
    %c0_i32 = arith.constant 0 : i32
    return %arg2, %arg1 : i32, i32
  }
  func.func @transform_2(%arg0: i32, %arg1: i32, %arg2: i32) -> (i32, i32) {
    %c0_i32 = arith.constant 0 : i32
    return %arg2, %arg1 : i32, i32
  }
  func.func @transform_3(%arg0: i32, %arg1: i32, %arg2: i32) -> (i32, i32) {
    %c0_i32 = arith.constant 0 : i32
    return %arg0, %arg1 : i32, i32
  }
  func.func @transform_4(%arg0: i32, %arg1: i32, %arg2: i32) -> (i32, i32) {
    %c0_i32 = arith.constant 0 : i32
    return %arg0, %arg1 : i32, i32
  }
  func.func @transform_5(%arg0: i32, %arg1: i32, %arg2: i32) -> (i32, i32, i32) {
    %c0_i32 = arith.constant 0 : i32
    %c0_i32_0 = arith.constant 0 : i32
    return %arg0, %c0_i32, %arg1 : i32, i32, i32
  }
  func.func @transform_6(%arg0: i32, %arg1: i32, %arg2: i32) -> (i32, i32, i32) {
    %c0_i32 = arith.constant 0 : i32
    %c0_i32_0 = arith.constant 0 : i32
    return %arg0, %c0_i32, %arg1 : i32, i32, i32
  }
}

module attributes {stable_mosaic.version = 11 : i64} {
  func.func @kernel(%arg0: i32, %arg1: i32, %arg2: i32, %arg3: memref<128x128xf32, #tpu.memory_space<vmem>>, %arg4: memref<128x128xf32, #tpu.memory_space<vmem>>, %arg5: memref<128x128xf32, #tpu.memory_space<vmem>>, %arg6: memref<128x128xf32, #tpu.memory_space<vmem>>, %arg7: memref<1x1x128xf32, #tpu.memory_space<vmem>>, %arg8: memref<1x1x128xf32, #tpu.memory_space<vmem>>, %arg9: memref<128x128xf32, #tpu.memory_space<vmem>>) attributes {dimension_semantics = [#tpu.dimension_semantics<parallel>, #tpu.dimension_semantics<parallel>, #tpu.dimension_semantics<arbitrary>], iteration_bounds = array<i64: 1, 1, 1>, scalar_prefetch = 0 : i64, scratch_operands = 1 : i64, tpu.core_type = #tpu.core_type<tc>, window_params = [{transform_indices = @transform_0, window_bounds = array<i64: 128, 128>}, {transform_indices = @transform_1, window_bounds = array<i64: 128, 128>}, {transform_indices = @transform_2, window_bounds = array<i64: 128, 128>}, {transform_indices = @transform_3, window_bounds = array<i64: 128, 128>}, {transform_indices = @transform_4, window_bounds = array<i64: 1, 1, 128>}, {transform_indices = @transform_5, window_bounds = array<i64: 1, 1, 128>}]} {
    %c0_i32 = arith.constant 0 : i32
    %0 = arith.cmpi eq, %arg2, %c0_i32 : i32
    %1 = arith.extui %0 : i1 to i32
    %c0_i32_0 = arith.constant 0 : i32
    %2 = arith.cmpi ne, %1, %c0_i32_0 : i32
    scf.if %2 {
      %c0_10 = arith.constant 0 : index
      %c0_11 = arith.constant 0 : index
      %12 = vector.load %arg5[%c0_10, %c0_11] : memref<128x128xf32, #tpu.memory_space<vmem>>, vector<128x128xf32>
      %c0_12 = arith.constant 0 : index
      %c0_13 = arith.constant 0 : index
      %13 = vector.load %arg9[%c0_12, %c0_13] : memref<128x128xf32, #tpu.memory_space<vmem>>, vector<128x128xf32>
      tpu.vector_store %arg9[%c0_12, %c0_13], %12 {strides = array<i32>} : memref<128x128xf32, #tpu.memory_space<vmem>>, vector<128x128xf32>,
    } else {
    }
    %c0 = arith.constant 0 : index
    %c0_1 = arith.constant 0 : index
    %3 = vector.load %arg3[%c0, %c0_1] : memref<128x128xf32, #tpu.memory_space<vmem>>, vector<128x128xf32>
    %c0_2 = arith.constant 0 : index
    %c0_3 = arith.constant 0 : index
    %4 = vector.load %arg9[%c0_2, %c0_3] : memref<128x128xf32, #tpu.memory_space<vmem>>, vector<128x128xf32>
    %c0_4 = arith.constant 0 : index
    %c0_5 = arith.constant 0 : index
    %5 = vector.load %arg4[%c0_4, %c0_5] : memref<128x128xf32, #tpu.memory_space<vmem>>, vector<128x128xf32>
    %cst = arith.constant dense<0.000000e+00> : vector<128x128xf32>
    %6 = tpu.matmul %3, %5, %cst {dimension_numbers = #tpu.dot_dimension_numbers<[1], [0], [0], [1], [0, 0, 1, 1], [], []>} : vector<128x128xf32>, vector<128x128xf32>, vector<128x128xf32> -> vector<128x128xf32>
    %7 = arith.addf %4, %6 : vector<128x128xf32>
    %c0_6 = arith.constant 0 : index
    %c0_7 = arith.constant 0 : index
    %8 = vector.load %arg9[%c0_6, %c0_7] : memref<128x128xf32, #tpu.memory_space<vmem>>, vector<128x128xf32>
    tpu.vector_store %arg9[%c0_6, %c0_7], %7 {strides = array<i32>} : memref<128x128xf32, #tpu.memory_space<vmem>>, vector<128x128xf32>,
    %c0_i32_8 = arith.constant 0 : i32
    %9 = arith.cmpi eq, %arg2, %c0_i32_8 : i32
    %10 = arith.extui %9 : i1 to i32
    %c0_i32_9 = arith.constant 0 : i32
    %11 = arith.cmpi ne, %10, %c0_i32_9 : i32
    scf.if %11 {
      %c0_10 = arith.constant 0 : index
      %c0_11 = arith.constant 0 : index
      %12 = vector.load %arg9[%c0_10, %c0_11] : memref<128x128xf32, #tpu.memory_space<vmem>>, vector<128x128xf32>
      %c0_12 = arith.constant 0 : index
      %c0_13 = arith.constant 0 : index
      %13 = vector.load %arg6[%c0_12, %c0_13] : memref<128x128xf32, #tpu.memory_space<vmem>>, vector<128x128xf32>
      tpu.vector_store %arg6[%c0_12, %c0_13], %12 {strides = array<i32>} : memref<128x128xf32, #tpu.memory_space<vmem>>, vector<128x128xf32>,
      %cst_14 = arith.constant dense<0.000000e+00> : vector<128xf32>
      %14 = vector.multi_reduction <add>, %12, %cst_14 [0] : vector<128x128xf32> to vector<128xf32>
      %15 = vector.shape_cast %14 : vector<128xf32> to vector<1x1x128xf32>
      %c0_15 = arith.constant 0 : index
      %c0_16 = arith.constant 0 : index
      %c0_17 = arith.constant 0 : index
      %16 = vector.load %arg7[%c0_15, %c0_16, %c0_17] : memref<1x1x128xf32, #tpu.memory_space<vmem>>, vector<1x1x128xf32>
      tpu.vector_store %arg7[%c0_15, %c0_16, %c0_17], %15 {strides = array<i32>} : memref<1x1x128xf32, #tpu.memory_space<vmem>>, vector<1x1x128xf32>,
      %17 = arith.mulf %12, %12 : vector<128x128xf32>
      %cst_18 = arith.constant dense<0.000000e+00> : vector<128xf32>
      %18 = vector.multi_reduction <add>, %17, %cst_18 [0] : vector<128x128xf32> to vector<128xf32>
      %19 = vector.shape_cast %18 : vector<128xf32> to vector<1x1x128xf32>
      %c0_19 = arith.constant 0 : index
      %c0_20 = arith.constant 0 : index
      %c0_21 = arith.constant 0 : index
      %20 = vector.load %arg8[%c0_19, %c0_20, %c0_21] : memref<1x1x128xf32, #tpu.memory_space<vmem>>, vector<1x1x128xf32>
      tpu.vector_store %arg8[%c0_19, %c0_20, %c0_21], %19 {strides = array<i32>} : memref<1x1x128xf32, #tpu.memory_space<vmem>>, vector<1x1x128xf32>,
    } else {
    }
    return
  }
  func.func @transform_0(%arg0: i32, %arg1: i32, %arg2: i32) -> (i32, i32) {
    %c0_i32 = arith.constant 0 : i32
    return %arg0, %arg2 : i32, i32
  }
  func.func @transform_1(%arg0: i32, %arg1: i32, %arg2: i32) -> (i32, i32) {
    %c0_i32 = arith.constant 0 : i32
    return %arg2, %arg1 : i32, i32
  }
  func.func @transform_2(%arg0: i32, %arg1: i32, %arg2: i32) -> (i32, i32) {
    %c0_i32 = arith.constant 0 : i32
    return %arg0, %arg1 : i32, i32
  }
  func.func @transform_3(%arg0: i32, %arg1: i32, %arg2: i32) -> (i32, i32) {
    %c0_i32 = arith.constant 0 : i32
    return %arg0, %arg1 : i32, i32
  }
  func.func @transform_4(%arg0: i32, %arg1: i32, %arg2: i32) -> (i32, i32, i32) {
    %c0_i32 = arith.constant 0 : i32
    %c0_i32_0 = arith.constant 0 : i32
    return %arg0, %c0_i32, %arg1 : i32, i32, i32
  }
  func.func @transform_5(%arg0: i32, %arg1: i32, %arg2: i32) -> (i32, i32, i32) {
    %c0_i32 = arith.constant 0 : i32
    %c0_i32_0 = arith.constant 0 : i32
    return %arg0, %c0_i32, %arg1 : i32, i32, i32
  }
}

module attributes {stable_mosaic.version = 11 : i64} {
  func.func @kernel(%arg0: i32, %arg1: i32, %arg2: i32, %arg3: memref<128x128xf32, #tpu.memory_space<vmem>>, %arg4: memref<128x128xf32, #tpu.memory_space<vmem>>, %arg5: memref<128x128xf32, #tpu.memory_space<vmem>>, %arg6: memref<1x1x128xf32, #tpu.memory_space<vmem>>, %arg7: memref<1x1x128xf32, #tpu.memory_space<vmem>>, %arg8: memref<128x128xf32, #tpu.memory_space<vmem>>) attributes {dimension_semantics = [#tpu.dimension_semantics<parallel>, #tpu.dimension_semantics<parallel>, #tpu.dimension_semantics<arbitrary>], iteration_bounds = array<i64: 1, 1, 1>, scalar_prefetch = 0 : i64, scratch_operands = 1 : i64, tpu.core_type = #tpu.core_type<tc>, window_params = [{transform_indices = @transform_0, window_bounds = array<i64: 128, 128>}, {transform_indices = @transform_1, window_bounds = array<i64: 128, 128>}, {transform_indices = @transform_2, window_bounds = array<i64: 128, 128>}, {transform_indices = @transform_3, window_bounds = array<i64: 1, 1, 128>}, {transform_indices = @transform_4, window_bounds = array<i64: 1, 1, 128>}]} {
    %c0_i32 = arith.constant 0 : i32
    %0 = arith.cmpi eq, %arg2, %c0_i32 : i32
    %1 = arith.extui %0 : i1 to i32
    %c0_i32_0 = arith.constant 0 : i32
    %2 = arith.cmpi ne, %1, %c0_i32_0 : i32
    scf.if %2 {
      %cst_10 = arith.constant 0.000000e+00 : f32
      %12 = vector.broadcast %cst_10 : f32 to vector<128x128xf32>
      %c0_11 = arith.constant 0 : index
      %c0_12 = arith.constant 0 : index
      %13 = vector.load %arg8[%c0_11, %c0_12] : memref<128x128xf32, #tpu.memory_space<vmem>>, vector<128x128xf32>
      tpu.vector_store %arg8[%c0_11, %c0_12], %12 {strides = array<i32>} : memref<128x128xf32, #tpu.memory_space<vmem>>, vector<128x128xf32>,
    } else {
    }
    %c0 = arith.constant 0 : index
    %c0_1 = arith.constant 0 : index
    %3 = vector.load %arg3[%c0, %c0_1] : memref<128x128xf32, #tpu.memory_space<vmem>>, vector<128x128xf32>
    %c0_2 = arith.constant 0 : index
    %c0_3 = arith.constant 0 : index
    %4 = vector.load %arg8[%c0_2, %c0_3] : memref<128x128xf32, #tpu.memory_space<vmem>>, vector<128x128xf32>
    %c0_4 = arith.constant 0 : index
    %c0_5 = arith.constant 0 : index
    %5 = vector.load %arg4[%c0_4, %c0_5] : memref<128x128xf32, #tpu.memory_space<vmem>>, vector<128x128xf32>
    %cst = arith.constant dense<0.000000e+00> : vector<128x128xf32>
    %6 = tpu.matmul %3, %5, %cst {dimension_numbers = #tpu.dot_dimension_numbers<[1], [0], [0], [1], [0, 0, 1, 1], [], []>} : vector<128x128xf32>, vector<128x128xf32>, vector<128x128xf32> -> vector<128x128xf32>
    %7 = arith.addf %4, %6 : vector<128x128xf32>
    %c0_6 = arith.constant 0 : index
    %c0_7 = arith.constant 0 : index
    %8 = vector.load %arg8[%c0_6, %c0_7] : memref<128x128xf32, #tpu.memory_space<vmem>>, vector<128x128xf32>
    tpu.vector_store %arg8[%c0_6, %c0_7], %7 {strides = array<i32>} : memref<128x128xf32, #tpu.memory_space<vmem>>, vector<128x128xf32>,
    %c0_i32_8 = arith.constant 0 : i32
    %9 = arith.cmpi eq, %arg2, %c0_i32_8 : i32
    %10 = arith.extui %9 : i1 to i32
    %c0_i32_9 = arith.constant 0 : i32
    %11 = arith.cmpi ne, %10, %c0_i32_9 : i32
    scf.if %11 {
      %c0_10 = arith.constant 0 : index
      %c0_11 = arith.constant 0 : index
      %12 = vector.load %arg8[%c0_10, %c0_11] : memref<128x128xf32, #tpu.memory_space<vmem>>, vector<128x128xf32>
      %c0_12 = arith.constant 0 : index
      %c0_13 = arith.constant 0 : index
      %13 = vector.load %arg5[%c0_12, %c0_13] : memref<128x128xf32, #tpu.memory_space<vmem>>, vector<128x128xf32>
      tpu.vector_store %arg5[%c0_12, %c0_13], %12 {strides = array<i32>} : memref<128x128xf32, #tpu.memory_space<vmem>>, vector<128x128xf32>,
      %cst_14 = arith.constant dense<0.000000e+00> : vector<128xf32>
      %14 = vector.multi_reduction <add>, %12, %cst_14 [0] : vector<128x128xf32> to vector<128xf32>
      %15 = vector.shape_cast %14 : vector<128xf32> to vector<1x1x128xf32>
      %c0_15 = arith.constant 0 : index
      %c0_16 = arith.constant 0 : index
      %c0_17 = arith.constant 0 : index
      %16 = vector.load %arg6[%c0_15, %c0_16, %c0_17] : memref<1x1x128xf32, #tpu.memory_space<vmem>>, vector<1x1x128xf32>
      tpu.vector_store %arg6[%c0_15, %c0_16, %c0_17], %15 {strides = array<i32>} : memref<1x1x128xf32, #tpu.memory_space<vmem>>, vector<1x1x128xf32>,
      %17 = arith.mulf %12, %12 : vector<128x128xf32>
      %cst_18 = arith.constant dense<0.000000e+00> : vector<128xf32>
      %18 = vector.multi_reduction <add>, %17, %cst_18 [0] : vector<128x128xf32> to vector<128xf32>
      %19 = vector.shape_cast %18 : vector<128xf32> to vector<1x1x128xf32>
      %c0_19 = arith.constant 0 : index
      %c0_20 = arith.constant 0 : index
      %c0_21 = arith.constant 0 : index
      %20 = vector.load %arg7[%c0_19, %c0_20, %c0_21] : memref<1x1x128xf32, #tpu.memory_space<vmem>>, vector<1x1x128xf32>
      tpu.vector_store %arg7[%c0_19, %c0_20, %c0_21], %19 {strides = array<i32>} : memref<1x1x128xf32, #tpu.memory_space<vmem>>, vector<1x1x128xf32>,
    } else {
    }
    return
  }
  func.func @transform_0(%arg0: i32, %arg1: i32, %arg2: i32) -> (i32, i32) {
    %c0_i32 = arith.constant 0 : i32
    return %arg0, %arg2 : i32, i32
  }
  func.func @transform_1(%arg0: i32, %arg1: i32, %arg2: i32) -> (i32, i32) {
    %c0_i32 = arith.constant 0 : i32
    return %arg2, %arg1 : i32, i32
  }
  func.func @transform_2(%arg0: i32, %arg1: i32, %arg2: i32) -> (i32, i32) {
    %c0_i32 = arith.constant 0 : i32
    return %arg0, %arg1 : i32, i32
  }
  func.func @transform_3(%arg0: i32, %arg1: i32, %arg2: i32) -> (i32, i32, i32) {
    %c0_i32 = arith.constant 0 : i32
    %c0_i32_0 = arith.constant 0 : i32
    return %arg0, %c0_i32, %arg1 : i32, i32, i32
  }
  func.func @transform_4(%arg0: i32, %arg1: i32, %arg2: i32) -> (i32, i32, i32) {
    %c0_i32 = arith.constant 0 : i32
    %c0_i32_0 = arith.constant 0 : i32
    return %arg0, %c0_i32, %arg1 : i32, i32, i32
  }
}

</mosaic_0001>

<llo_original>
// kernel: network_block_forward.5
$region0: #{network_block_forward.5}
  #allocation0 [shape = 'u32[]', space=smem, size = 0x4, offset = 0x4, fixed_abs, tag = 'smem constant byte address 0x4 - core index']
  #allocation1 [shape = 'u32[144,128]{1,0:T(1,128)}', space=vmem, size = 0x12000, scoped, tag = 'internal scratch']
  %s0 = inlined_call_operand.hbm [shape: f32[512,128], index: 0, kind: input, shape index: {}]
  %s1 = inlined_call_operand.hbm [shape: f32[1,1,128], index: 1, kind: output, shape index: {0}]
  %s2 = inlined_call_operand.hbm [shape: f32[1,1,128], index: 2, kind: output, shape index: {1}]
  %3 = xla_tuple %s1, %s2
  %s4 = sld [smem:[#allocation0]]
  $region26: #{network_block_forward.5} parent=0
    _
  %s6 = ssub.s32 1, %s4
  %s7 = scalar_select 0, %s6, %s4
  $region1: #{network_block_forward.5} parent=0
    #allocation2 [shape = 'u8[262144]{0}', space=vmem, size = 0x40000, scoped, tag = 'input window, operand 0, single buffered']
    #allocation3 [shape = 's32[1]{0}', space=sflag, size = 0x4, scoped, tag = 'scoped memory for network_block_forward.5']
    #allocation4 [shape = 's32[1]{0}', space=sflag, size = 0x4, scoped, tag = 'scoped memory for network_block_forward.5']
    #allocation5 [shape = 'u8[512]{0}', space=vmem, size = 0x400, scoped, tag = 'output window, operand 0, single buffered']
    #allocation6 [shape = 'u8[512]{0}', space=vmem, size = 0x400, scoped, tag = 'output window, operand 1, single buffered']
    #allocation7 [shape = 's32[1]{0}', space=sflag, size = 0x4, scoped, tag = 'scoped memory for network_block_forward.5']
    %8 = vsyncpa [#allocation3], 0
    %9 = vsyncpa [#allocation4], 0
    %10 = vsyncpa [#allocation7], 0
    // Predicated region
    $region2: #{network_block_forward.5} parent=1 // pred_check
      _
    $region3: #{network_block_forward.5} parent=1 // pred_check_branch
      %12 = sbr.rel (0) target = $region5
    $region4: #{network_block_forward.5} parent=1 // pred_region
      %s14 = ssub.s32 8192, 8192
      %15 = vsyncadd [#allocation3], %s14
      %s16 = sshll.u32 [#allocation2], 4
      %s17 = int_to_ptr.vmem [resolvable:$true] %s16
      %22 = dma.hbm_to_vmem [thread:$0]  %s0, 8192, %s17, [#allocation3], 128, 128, 8
    $region5: #{network_block_forward.5} parent=1 // pred_fallthru
      _
    // Predicated region
    $region6: #{network_block_forward.5} parent=1 // pred_check
      _
    $region7: #{network_block_forward.5} parent=1 // pred_check_branch
      %24 = sbr.rel (0) target = $region9
    $region8: #{network_block_forward.5} parent=1 // pred_region
      %25 = dma.done [#allocation3], 8192
    $region9: #{network_block_forward.5} parent=1 // pred_fallthru
      _
    %v26 = vld [vmem:[#allocation2] sm:$0xff]
    %v27 = vld [vmem:[#allocation2 + $0x8] sm:$0xff]
    %v28 = vld [vmem:[#allocation2 + $0x10] sm:$0xff]
    %v29 = vld [vmem:[#allocation2 + $0x18] sm:$0xff]
    %v30 = vld [vmem:[#allocation2 + $0x20] sm:$0xff]
    %v31 = vld [vmem:[#allocation2 + $0x28] sm:$0xff]
    %v32 = vld [vmem:[#allocation2 + $0x30] sm:$0xff]
    %v33 = vld [vmem:[#allocation2 + $0x38] sm:$0xff]
    %v34 = vld [vmem:[#allocation2 + $0x40] sm:$0xff]
    %v35 = vld [vmem:[#allocation2 + $0x48] sm:$0xff]
    %v36 = vld [vmem:[#allocation2 + $0x50] sm:$0xff]
    %v37 = vld [vmem:[#allocation2 + $0x58] sm:$0xff]
    %v38 = vld [vmem:[#allocation2 + $0x60] sm:$0xff]
    %v39 = vld [vmem:[#allocation2 + $0x68] sm:$0xff]
    %v40 = vld [vmem:[#allocation2 + $0x70] sm:$0xff]
    %v41 = vld [vmem:[#allocation2 + $0x78] sm:$0xff]
    %v42 = vld [vmem:[#allocation2 + $0x80] sm:$0xff]
    %v43 = vld [vmem:[#allocation2 + $0x88] sm:$0xff]
    %v44 = vld [vmem:[#allocation2 + $0x90] sm:$0xff]
    %v45 = vld [vmem:[#allocation2 + $0x98] sm:$0xff]
    %v46 = vld [vmem:[#allocation2 + $0xa0] sm:$0xff]
    %v47 = vld [vmem:[#allocation2 + $0xa8] sm:$0xff]
    %v48 = vld [vmem:[#allocation2 + $0xb0] sm:$0xff]
    %v49 = vld [vmem:[#allocation2 + $0xb8] sm:$0xff]
    %v50 = vld [vmem:[#allocation2 + $0xc0] sm:$0xff]
    %v51 = vld [vmem:[#allocation2 + $0xc8] sm:$0xff]
    %v52 = vld [vmem:[#allocation2 + $0xd0] sm:$0xff]
    %v53 = vld [vmem:[#allocation2 + $0xd8] sm:$0xff]
    %v54 = vld [vmem:[#allocation2 + $0xe0] sm:$0xff]
    %v55 = vld [vmem:[#allocation2 + $0xe8] sm:$0xff]
    %v56 = vld [vmem:[#allocation2 + $0xf0] sm:$0xff]
    %v57 = vld [vmem:[#allocation2 + $0xf8] sm:$0xff]
    %v58 = vld [vmem:[#allocation2 + $0x100] sm:$0xff]
    %v59 = vld [vmem:[#allocation2 + $0x108] sm:$0xff]
    %v60 = vld [vmem:[#allocation2 + $0x110] sm:$0xff]
    %v61 = vld [vmem:[#allocation2 + $0x118] sm:$0xff]
    %v62 = vld [vmem:[#allocation2 + $0x120] sm:$0xff]
    %v63 = vld [vmem:[#allocation2 + $0x128] sm:$0xff]
    %v64 = vld [vmem:[#allocation2 + $0x130] sm:$0xff]
    %v65 = vld [vmem:[#allocation2 + $0x138] sm:$0xff]
    %v66 = vld [vmem:[#allocation2 + $0x140] sm:$0xff]
    %v67 = vld [vmem:[#allocation2 + $0x148] sm:$0xff]
    %v68 = vld [vmem:[#allocation2 + $0x150] sm:$0xff]
    %v69 = vld [vmem:[#allocation2 + $0x158] sm:$0xff]
    %v70 = vld [vmem:[#allocation2 + $0x160] sm:$0xff]
    %v71 = vld [vmem:[#allocation2 + $0x168] sm:$0xff]
    %v72 = vld [vmem:[#allocation2 + $0x170] sm:$0xff]
    %v73 = vld [vmem:[#allocation2 + $0x178] sm:$0xff]
    %v74 = vld [vmem:[#allocation2 + $0x180] sm:$0xff]
    %v75 = vld [vmem:[#allocation2 + $0x188] sm:$0xff]
    %v76 = vld [vmem:[#allocation2 + $0x190] sm:$0xff]
    %v77 = vld [vmem:[#allocation2 + $0x198] sm:$0xff]
    %v78 = vld [vmem:[#allocation2 + $0x1a0] sm:$0xff]
    %v79 = vld [vmem:[#allocation2 + $0x1a8] sm:$0xff]
    %v80 = vld [vmem:[#allocation2 + $0x1b0] sm:$0xff]
    %v81 = vld [vmem:[#allocation2 + $0x1b8] sm:$0xff]
    %v82 = vld [vmem:[#allocation2 + $0x1c0] sm:$0xff]
    %v83 = vld [vmem:[#allocation2 + $0x1c8] sm:$0xff]
    %v84 = vld [vmem:[#allocation2 + $0x1d0] sm:$0xff]
    %v85 = vld [vmem:[#allocation2 + $0x1d8] sm:$0xff]
    %v86 = vld [vmem:[#allocation2 + $0x1e0] sm:$0xff]
    %v87 = vld [vmem:[#allocation2 + $0x1e8] sm:$0xff]
    %v88 = vld [vmem:[#allocation2 + $0x1f0] sm:$0xff]
    %v89 = vld [vmem:[#allocation2 + $0x1f8] sm:$0xff]
    %v90 = vadd.f32 %v26, %v27
    %v91 = vadd.f32 %v90, %v28
    %v92 = vadd.f32 %v91, %v29
    %v93 = vadd.f32 %v92, %v30
    %v94 = vadd.f32 %v93, %v31
    %v95 = vadd.f32 %v94, %v32
    %v96 = vadd.f32 %v95, %v33
    %v97 = vadd.f32 %v96, %v34
    %v98 = vadd.f32 %v97, %v35
    %v99 = vadd.f32 %v98, %v36
    %v100 = vadd.f32 %v99, %v37
    %v101 = vadd.f32 %v100, %v38
    %v102 = vadd.f32 %v101, %v39
    %v103 = vadd.f32 %v102, %v40
    %v104 = vadd.f32 %v103, %v41
    %v105 = vadd.f32 %v104, %v42
    %v106 = vadd.f32 %v105, %v43
    %v107 = vadd.f32 %v106, %v44
    %v108 = vadd.f32 %v107, %v45
    %v109 = vadd.f32 %v108, %v46
    %v110 = vadd.f32 %v109, %v47
    %v111 = vadd.f32 %v110, %v48
    %v112 = vadd.f32 %v111, %v49
    %v113 = vadd.f32 %v112, %v50
    %v114 = vadd.f32 %v113, %v51
    %v115 = vadd.f32 %v114, %v52
    %v116 = vadd.f32 %v115, %v53
    %v117 = vadd.f32 %v116, %v54
    %v118 = vadd.f32 %v117, %v55
    %v119 = vadd.f32 %v118, %v56
    %v120 = vadd.f32 %v119, %v57
    %v121 = vadd.f32 %v120, %v58
    %v122 = vadd.f32 %v121, %v59
    %v123 = vadd.f32 %v122, %v60
    %v124 = vadd.f32 %v123, %v61
    %v125 = vadd.f32 %v124, %v62
    %v126 = vadd.f32 %v125, %v63
    %v127 = vadd.f32 %v126, %v64
    %v128 = vadd.f32 %v127, %v65
    %v129 = vadd.f32 %v128, %v66
    %v130 = vadd.f32 %v129, %v67
    %v131 = vadd.f32 %v130, %v68
    %v132 = vadd.f32 %v131, %v69
    %v133 = vadd.f32 %v132, %v70
    %v134 = vadd.f32 %v133, %v71
    %v135 = vadd.f32 %v134, %v72
    %v136 = vadd.f32 %v135, %v73
    %v137 = vadd.f32 %v136, %v74
    %v138 = vadd.f32 %v137, %v75
    %v139 = vadd.f32 %v138, %v76
    %v140 = vadd.f32 %v139, %v77
    %v141 = vadd.f32 %v140, %v78
    %v142 = vadd.f32 %v141, %v79
    %v143 = vadd.f32 %v142, %v80
    %v144 = vadd.f32 %v143, %v81
    %v145 = vadd.f32 %v144, %v82
    %v146 = vadd.f32 %v145, %v83
    %v147 = vadd.f32 %v146, %v84
    %v148 = vadd.f32 %v147, %v85
    %v149 = vadd.f32 %v148, %v86
    %v150 = vadd.f32 %v149, %v87
    %v151 = vadd.f32 %v150, %v88
    %v152 = vadd.f32 %v151, %v89
    %v153 = vrot.slane %v152, 4
    %v154 = vadd.f32 %v152, %v153
    %v155 = vrot.slane %v154, 2
    %v156 = vadd.f32 %v154, %v155
    %v157 = vrot.slane %v156, 1
    %v158 = vadd.f32 %v156, %v157
    %159 = vst [vmem:[#allocation5] sm:$0x1] %v158
    %v160 = vmul.f32 %v26, %v26
    %v161 = vmul.f32 %v27, %v27
    %v162 = vmul.f32 %v28, %v28
    %v163 = vmul.f32 %v29, %v29
    %v164 = vmul.f32 %v30, %v30
    %v165 = vmul.f32 %v31, %v31
    %v166 = vmul.f32 %v32, %v32
    %v167 = vmul.f32 %v33, %v33
    %v168 = vmul.f32 %v34, %v34
    %v169 = vmul.f32 %v35, %v35
    %v170 = vmul.f32 %v36, %v36
    %v171 = vmul.f32 %v37, %v37
    %v172 = vmul.f32 %v38, %v38
    %v173 = vmul.f32 %v39, %v39
    %v174 = vmul.f32 %v40, %v40
    %v175 = vmul.f32 %v41, %v41
    %v176 = vmul.f32 %v42, %v42
    %v177 = vmul.f32 %v43, %v43
    %v178 = vmul.f32 %v44, %v44
    %v179 = vmul.f32 %v45, %v45
    %v180 = vmul.f32 %v46, %v46
    %v181 = vmul.f32 %v47, %v47
    %v182 = vmul.f32 %v48, %v48
    %v183 = vmul.f32 %v49, %v49
    %v184 = vmul.f32 %v50, %v50
    %v185 = vmul.f32 %v51, %v51
    %v186 = vmul.f32 %v52, %v52
    %v187 = vmul.f32 %v53, %v53
    %v188 = vmul.f32 %v54, %v54
    %v189 = vmul.f32 %v55, %v55
    %v190 = vmul.f32 %v56, %v56
    %v191 = vmul.f32 %v57, %v57
    %v192 = vmul.f32 %v58, %v58
    %v193 = vmul.f32 %v59, %v59
    %v194 = vmul.f32 %v60, %v60
    %v195 = vmul.f32 %v61, %v61
    %v196 = vmul.f32 %v62, %v62
    %v197 = vmul.f32 %v63, %v63
    %v198 = vmul.f32 %v64, %v64
    %v199 = vmul.f32 %v65, %v65
    %v200 = vmul.f32 %v66, %v66
    %v201 = vmul.f32 %v67, %v67
    %v202 = vmul.f32 %v68, %v68
    %v203 = vmul.f32 %v69, %v69
    %v204 = vmul.f32 %v70, %v70
    %v205 = vmul.f32 %v71, %v71
    %v206 = vmul.f32 %v72, %v72
    %v207 = vmul.f32 %v73, %v73
    %v208 = vmul.f32 %v74, %v74
    %v209 = vmul.f32 %v75, %v75
    %v210 = vmul.f32 %v76, %v76
    %v211 = vmul.f32 %v77, %v77
    %v212 = vmul.f32 %v78, %v78
    %v213 = vmul.f32 %v79, %v79
    %v214 = vmul.f32 %v80, %v80
    %v215 = vmul.f32 %v81, %v81
    %v216 = vmul.f32 %v82, %v82
    %v217 = vmul.f32 %v83, %v83
    %v218 = vmul.f32 %v84, %v84
    %v219 = vmul.f32 %v85, %v85
    %v220 = vmul.f32 %v86, %v86
    %v221 = vmul.f32 %v87, %v87
    %v222 = vmul.f32 %v88, %v88
    %v223 = vmul.f32 %v89, %v89
    %v224 = vadd.f32 %v160, %v161
    %v225 = vadd.f32 %v224, %v162
    %v226 = vadd.f32 %v225, %v163
    %v227 = vadd.f32 %v226, %v164
    %v228 = vadd.f32 %v227, %v165
    %v229 = vadd.f32 %v228, %v166
    %v230 = vadd.f32 %v229, %v167
    %v231 = vadd.f32 %v230, %v168
    %v232 = vadd.f32 %v231, %v169
    %v233 = vadd.f32 %v232, %v170
    %v234 = vadd.f32 %v233, %v171
    %v235 = vadd.f32 %v234, %v172
    %v236 = vadd.f32 %v235, %v173
    %v237 = vadd.f32 %v236, %v174
    %v238 = vadd.f32 %v237, %v175
    %v239 = vadd.f32 %v238, %v176
    %v240 = vadd.f32 %v239, %v177
    %v241 = vadd.f32 %v240, %v178
    %v242 = vadd.f32 %v241, %v179
    %v243 = vadd.f32 %v242, %v180
    %v244 = vadd.f32 %v243, %v181
    %v245 = vadd.f32 %v244, %v182
    %v246 = vadd.f32 %v245, %v183
    %v247 = vadd.f32 %v246, %v184
    %v248 = vadd.f32 %v247, %v185
    %v249 = vadd.f32 %v248, %v186
    %v250 = vadd.f32 %v249, %v187
    %v251 = vadd.f32 %v250, %v188
    %v252 = vadd.f32 %v251, %v189
    %v253 = vadd.f32 %v252, %v190
    %v254 = vadd.f32 %v253, %v191
    %v255 = vadd.f32 %v254, %v192
    %v256 = vadd.f32 %v255, %v193
    %v257 = vadd.f32 %v256, %v194
    %v258 = vadd.f32 %v257, %v195
    %v259 = vadd.f32 %v258, %v196
    %v260 = vadd.f32 %v259, %v197
    %v261 = vadd.f32 %v260, %v198
    %v262 = vadd.f32 %v261, %v199
    %v263 = vadd.f32 %v262, %v200
    %v264 = vadd.f32 %v263, %v201
    %v265 = vadd.f32 %v264, %v202
    %v266 = vadd.f32 %v265, %v203
    %v267 = vadd.f32 %v266, %v204
    %v268 = vadd.f32 %v267, %v205
    %v269 = vadd.f32 %v268, %v206
    %v270 = vadd.f32 %v269, %v207
    %v271 = vadd.f32 %v270, %v208
    %v272 = vadd.f32 %v271, %v209
    %v273 = vadd.f32 %v272, %v210
    %v274 = vadd.f32 %v273, %v211
    %v275 = vadd.f32 %v274, %v212
    %v276 = vadd.f32 %v275, %v213
    %v277 = vadd.f32 %v276, %v214
    %v278 = vadd.f32 %v277, %v215
    %v279 = vadd.f32 %v278, %v216
    %v280 = vadd.f32 %v279, %v217
    %v281 = vadd.f32 %v280, %v218
    %v282 = vadd.f32 %v281, %v219
    %v283 = vadd.f32 %v282, %v220
    %v284 = vadd.f32 %v283, %v221
    %v285 = vadd.f32 %v284, %v222
    %v286 = vadd.f32 %v285, %v223
    %v287 = vrot.slane %v286, 4
    %v288 = vadd.f32 %v286, %v287
    %v289 = vrot.slane %v288, 2
    %v290 = vadd.f32 %v288, %v289
    %v291 = vrot.slane %v290, 1
    %v292 = vadd.f32 %v290, %v291
    %293 = vst [vmem:[#allocation6] sm:$0x1] %v292
    // Predicated region
    $region10: #{network_block_forward.5} parent=1 // pred_check
      _
    $region11: #{network_block_forward.5} parent=1 // pred_check_branch
      %295 = sbr.rel (0) target = $region13
    $region12: #{network_block_forward.5} parent=1 // pred_region
      %s297 = ssub.s32 16, 16
      %298 = vsyncadd [#allocation4], %s297
      %s300 = sshll.u32 [#allocation5], 4
      %s301 = int_to_ptr.vmem [resolvable:$true] %s300
      %303 = dma.vmem_to_hbm [thread:$0]  %s301, 16, %s1, [#allocation4]
    $region13: #{network_block_forward.5} parent=1 // pred_fallthru
      _
    // Predicated region
    $region14: #{network_block_forward.5} parent=1 // pred_check
      _
    $region15: #{network_block_forward.5} parent=1 // pred_check_branch
      %305 = sbr.rel (0) target = $region17
    $region16: #{network_block_forward.5} parent=1 // pred_region
      %s307 = ssub.s32 16, 16
      %308 = vsyncadd [#allocation7], %s307
      %s310 = sshll.u32 [#allocation6], 4
      %s311 = int_to_ptr.vmem [resolvable:$true] %s310
      %313 = dma.vmem_to_hbm [thread:$0]  %s311, 16, %s2, [#allocation7]
    $region17: #{network_block_forward.5} parent=1 // pred_fallthru
      _
    // Predicated region
    $region18: #{network_block_forward.5} parent=1 // pred_check
      _
    $region19: #{network_block_forward.5} parent=1 // pred_check_branch
      %315 = sbr.rel (0) target = $region21
    $region20: #{network_block_forward.5} parent=1 // pred_region
      %316 = dma.done [#allocation4], 16
    $region21: #{network_block_forward.5} parent=1 // pred_fallthru
      _
    // Predicated region
    $region22: #{network_block_forward.5} parent=1 // pred_check
      _
    $region23: #{network_block_forward.5} parent=1 // pred_check_branch
      %318 = sbr.rel (0) target = $region25
    $region24: #{network_block_forward.5} parent=1 // pred_region
      %319 = dma.done [#allocation7], 16
    $region25: #{network_block_forward.5} parent=1 // pred_fallthru
      _
    %320 = vsyncpa [#allocation3], 1
    %321 = vsyncpa [#allocation4], 1
    %322 = vsyncpa [#allocation7], 1

// kernel: network_block_forward.7
$region0: #{network_block_forward.7}
  #allocation0 [shape = 'u32[]', space=smem, size = 0x4, offset = 0x4, fixed_abs, tag = 'smem constant byte address 0x4 - core index']
  #allocation1 [shape = 'u32[144,128]{1,0:T(1,128)}', space=vmem, size = 0x12000, scoped, tag = 'internal scratch']
  #allocation2 [shape = 'f32[128,128]{1,0:T(8,128)}', space=vmem, size = 0x10000, scoped, tag = 'scratch operand']
  %s0 = inlined_call_operand.hbm [shape: f32[128,128], index: 0, kind: input, shape index: {}]
  %s1 = inlined_call_operand.hbm [shape: f32[128,128], index: 1, kind: input, shape index: {}]
  %s2 = inlined_call_operand.hbm [shape: f32[128,128], index: 2, kind: input, shape index: {}]
  %s3 = inlined_call_operand.hbm [shape: f32[128,128], index: 3, kind: output, shape index: {0}]
  %s4 = inlined_call_operand.hbm [shape: f32[1,1,128], index: 4, kind: output, shape index: {1}]
  %s5 = inlined_call_operand.hbm [shape: f32[1,1,128], index: 5, kind: output, shape index: {2}]
  %6 = xla_tuple %s3, %s4, %s5
  %s7 = sld [smem:[#allocation0]]
  $region58: #{network_block_forward.7} parent=0
    _
  %s9 = ssub.s32 1, %s7
  %s10 = scalar_select 0, %s9, %s7
  $region1: #{network_block_forward.7} parent=0
    #allocation3 [shape = 'u8[65536]{0}', space=vmem, size = 0x10000, scoped, tag = 'input window, operand 0, single buffered']
    #allocation4 [shape = 's32[1]{0}', space=sflag, size = 0x4, scoped, tag = 'scoped memory for network_block_forward.7']
    #allocation5 [shape = 's32[1]{0}', space=sflag, size = 0x4, scoped, tag = 'scoped memory for network_block_forward.7']
    #allocation6 [shape = 'u8[65536]{0}', space=vmem, size = 0x10000, scoped, tag = 'input window, operand 1, single buffered']
    #allocation7 [shape = 's32[1]{0}', space=sflag, size = 0x4, scoped, tag = 'scoped memory for network_block_forward.7']
    #allocation8 [shape = 'u8[65536]{0}', space=vmem, size = 0x10000, scoped, tag = 'input window, operand 2, single buffered']
    #allocation9 [shape = 'u8[65536]{0}', space=vmem, size = 0x10000, scoped, tag = 'output window, operand 0, single buffered']
    #allocation10 [shape = 'u8[512]{0}', space=vmem, size = 0x400, scoped, tag = 'output window, operand 1, single buffered']
    #allocation11 [shape = 's32[1]{0}', space=sflag, size = 0x4, scoped, tag = 'scoped memory for network_block_forward.7']
    #allocation12 [shape = 'u8[512]{0}', space=vmem, size = 0x400, scoped, tag = 'output window, operand 2, single buffered']
    %11 = vsyncpa [#allocation4], 0
    %12 = vsyncpa [#allocation7], 0
    %13 = vsyncpa [#allocation5], 0
    %14 = vsyncpa [#allocation11], 0
    // Predicated region
    $region2: #{network_block_forward.7} parent=1 // pred_check
      _
    $region3: #{network_block_forward.7} parent=1 // pred_check_branch
      %16 = sbr.rel (0) target = $region5
    $region4: #{network_block_forward.7} parent=1 // pred_region
      %s18 = ssub.s32 2048, 2048
      %19 = vsyncadd [#allocation4], %s18
      %s20 = sshll.u32 [#allocation3], 4
      %s21 = int_to_ptr.vmem [resolvable:$true] %s20
      %26 = dma.hbm_to_vmem [thread:$0]  %s0, 2048, %s21, [#allocation4], 128, 128, 8
    $region5: #{network_block_forward.7} parent=1 // pred_fallthru
      _
    // Predicated region
    $region6: #{network_block_forward.7} parent=1 // pred_check
      _
    $region7: #{network_block_forward.7} parent=1 // pred_check_branch
      %28 = sbr.rel (0) target = $region9
    $region8: #{network_block_forward.7} parent=1 // pred_region
      %s30 = ssub.s32 2048, 2048
      %31 = vsyncadd [#allocation7], %s30
      %s32 = sshll.u32 [#allocation6], 4
      %s33 = int_to_ptr.vmem [resolvable:$true] %s32
      %38 = dma.hbm_to_vmem [thread:$0]  %s1, 2048, %s33, [#allocation7], 128, 128, 8
    $region9: #{network_block_forward.7} parent=1 // pred_fallthru
      _
    // Predicated region
    $region10: #{network_block_forward.7} parent=1 // pred_check
      _
    $region11: #{network_block_forward.7} parent=1 // pred_check_branch
      %40 = sbr.rel (0) target = $region13
    $region12: #{network_block_forward.7} parent=1 // pred_region
      %s42 = ssub.s32 2048, 2048
      %43 = vsyncadd [#allocation7], %s42
      %s44 = sshll.u32 [#allocation8], 4
      %s45 = int_to_ptr.vmem [resolvable:$true] %s44
      %50 = dma.hbm_to_vmem [thread:$0]  %s2, 2048, %s45, [#allocation7], 128, 128, 8
    $region13: #{network_block_forward.7} parent=1 // pred_fallthru
      _
    // Predicated region
    $region14: #{network_block_forward.7} parent=1 // pred_check
      _
    $region15: #{network_block_forward.7} parent=1 // pred_check_branch
      %52 = sbr.rel (0) target = $region17
    $region16: #{network_block_forward.7} parent=1 // pred_region
      %53 = dma.done [#allocation4], 2048
    $region17: #{network_block_forward.7} parent=1 // pred_fallthru
      _
    // Predicated region
    $region18: #{network_block_forward.7} parent=1 // pred_check
      _
    $region19: #{network_block_forward.7} parent=1 // pred_check_branch
      %55 = sbr.rel (0) target = $region21
    $region20: #{network_block_forward.7} parent=1 // pred_region
      %56 = dma.done [#allocation7], 2048
    $region21: #{network_block_forward.7} parent=1 // pred_fallthru
      _
    // Predicated region
    $region22: #{network_block_forward.7} parent=1 // pred_check
      _
    $region23: #{network_block_forward.7} parent=1 // pred_check_branch
      %58 = sbr.rel (0) target = $region25
    $region24: #{network_block_forward.7} parent=1 // pred_region
      %59 = dma.done [#allocation7], 2048
    $region25: #{network_block_forward.7} parent=1 // pred_fallthru
      _
    %p60 = scmp.eq.s32.totalorder 0, 0
    // Predicated region
    $region26: #{network_block_forward.7} parent=1 // pred_check
      %p61 = pneg %p60
    $region27: #{network_block_forward.7} parent=1 // pred_check_branch
      %63 = sbr.rel (%p61) target = $region29
    $region28: #{network_block_forward.7} parent=1 // pred_region
      %v64 = vld [vmem:[#allocation8] sm:$0xff]
      %v65 = vld [vmem:[#allocation8 + $0x8] sm:$0xff]
      %v66 = vld [vmem:[#allocation8 + $0x10] sm:$0xff]
      %v67 = vld [vmem:[#allocation8 + $0x18] sm:$0xff]
      %v68 = vld [vmem:[#allocation8 + $0x20] sm:$0xff]
      %v69 = vld [vmem:[#allocation8 + $0x28] sm:$0xff]
      %v70 = vld [vmem:[#allocation8 + $0x30] sm:$0xff]
      %v71 = vld [vmem:[#allocation8 + $0x38] sm:$0xff]
      %v72 = vld [vmem:[#allocation8 + $0x40] sm:$0xff]
      %v73 = vld [vmem:[#allocation8 + $0x48] sm:$0xff]
      %v74 = vld [vmem:[#allocation8 + $0x50] sm:$0xff]
      %v75 = vld [vmem:[#allocation8 + $0x58] sm:$0xff]
      %v76 = vld [vmem:[#allocation8 + $0x60] sm:$0xff]
      %v77 = vld [vmem:[#allocation8 + $0x68] sm:$0xff]
      %v78 = vld [vmem:[#allocation8 + $0x70] sm:$0xff]
      %v79 = vld [vmem:[#allocation8 + $0x78] sm:$0xff]
      %80 = vst [vmem:[#allocation2] sm:$0xff] %v64
      %81 = vst [vmem:[#allocation2 + $0x8] sm:$0xff] %v65
      %82 = vst [vmem:[#allocation2 + $0x10] sm:$0xff] %v66
      %83 = vst [vmem:[#allocation2 + $0x18] sm:$0xff] %v67
      %84 = vst [vmem:[#allocation2 + $0x20] sm:$0xff] %v68
      %85 = vst [vmem:[#allocation2 + $0x28] sm:$0xff] %v69
      %86 = vst [vmem:[#allocation2 + $0x30] sm:$0xff] %v70
      %87 = vst [vmem:[#allocation2 + $0x38] sm:$0xff] %v71
      %88 = vst [vmem:[#allocation2 + $0x40] sm:$0xff] %v72
      %89 = vst [vmem:[#allocation2 + $0x48] sm:$0xff] %v73
      %90 = vst [vmem:[#allocation2 + $0x50] sm:$0xff] %v74
      %91 = vst [vmem:[#allocation2 + $0x58] sm:$0xff] %v75
      %92 = vst [vmem:[#allocation2 + $0x60] sm:$0xff] %v76
      %93 = vst [vmem:[#allocation2 + $0x68] sm:$0xff] %v77
      %94 = vst [vmem:[#allocation2 + $0x70] sm:$0xff] %v78
      %95 = vst [vmem:[#allocation2 + $0x78] sm:$0xff] %v79
    $region29: #{network_block_forward.7} parent=1 // pred_fallthru
      _
    %v96 = vld [vmem:[#allocation3] sm:$0xff]
    %v97 = vld [vmem:[#allocation3 + $0x8] sm:$0xff]
    %v98 = vld [vmem:[#allocation3 + $0x10] sm:$0xff]
    %v99 = vld [vmem:[#allocation3 + $0x18] sm:$0xff]
    %v100 = vld [vmem:[#allocation3 + $0x20] sm:$0xff]
    %v101 = vld [vmem:[#allocation3 + $0x28] sm:$0xff]
    %v102 = vld [vmem:[#allocation3 + $0x30] sm:$0xff]
    %v103 = vld [vmem:[#allocation3 + $0x38] sm:$0xff]
    %v104 = vld [vmem:[#allocation3 + $0x40] sm:$0xff]
    %v105 = vld [vmem:[#allocation3 + $0x48] sm:$0xff]
    %v106 = vld [vmem:[#allocation3 + $0x50] sm:$0xff]
    %v107 = vld [vmem:[#allocation3 + $0x58] sm:$0xff]
    %v108 = vld [vmem:[#allocation3 + $0x60] sm:$0xff]
    %v109 = vld [vmem:[#allocation3 + $0x68] sm:$0xff]
    %v110 = vld [vmem:[#allocation3 + $0x70] sm:$0xff]
    %v111 = vld [vmem:[#allocation3 + $0x78] sm:$0xff]
    %v112 = vld [vmem:[#allocation2] sm:$0xff]
    %v113 = vld [vmem:[#allocation2 + $0x8] sm:$0xff]
    %v114 = vld [vmem:[#allocation2 + $0x10] sm:$0xff]
    %v115 = vld [vmem:[#allocation2 + $0x18] sm:$0xff]
    %v116 = vld [vmem:[#allocation2 + $0x20] sm:$0xff]
    %v117 = vld [vmem:[#allocation2 + $0x28] sm:$0xff]
    %v118 = vld [vmem:[#allocation2 + $0x30] sm:$0xff]
    %v119 = vld [vmem:[#allocation2 + $0x38] sm:$0xff]
    %v120 = vld [vmem:[#allocation2 + $0x40] sm:$0xff]
    %v121 = vld [vmem:[#allocation2 + $0x48] sm:$0xff]
    %v122 = vld [vmem:[#allocation2 + $0x50] sm:$0xff]
    %v123 = vld [vmem:[#allocation2 + $0x58] sm:$0xff]
    %v124 = vld [vmem:[#allocation2 + $0x60] sm:$0xff]
    %v125 = vld [vmem:[#allocation2 + $0x68] sm:$0xff]
    %v126 = vld [vmem:[#allocation2 + $0x70] sm:$0xff]
    %v127 = vld [vmem:[#allocation2 + $0x78] sm:$0xff]
    %v128 = vld [vmem:[#allocation6] sm:$0xff]
    %v129 = vld [vmem:[#allocation6 + $0x8] sm:$0xff]
    %v130 = vld [vmem:[#allocation6 + $0x10] sm:$0xff]
    %v131 = vld [vmem:[#allocation6 + $0x18] sm:$0xff]
    %v132 = vld [vmem:[#allocation6 + $0x20] sm:$0xff]
    %v133 = vld [vmem:[#allocation6 + $0x28] sm:$0xff]
    %v134 = vld [vmem:[#allocation6 + $0x30] sm:$0xff]
    %v135 = vld [vmem:[#allocation6 + $0x38] sm:$0xff]
    %v136 = vld [vmem:[#allocation6 + $0x40] sm:$0xff]
    %v137 = vld [vmem:[#allocation6 + $0x48] sm:$0xff]
    %v138 = vld [vmem:[#allocation6 + $0x50] sm:$0xff]
    %v139 = vld [vmem:[#allocation6 + $0x58] sm:$0xff]
    %v140 = vld [vmem:[#allocation6 + $0x60] sm:$0xff]
    %v141 = vld [vmem:[#allocation6 + $0x68] sm:$0xff]
    %v142 = vld [vmem:[#allocation6 + $0x70] sm:$0xff]
    %v143 = vld [vmem:[#allocation6 + $0x78] sm:$0xff]
    %144 = vmatprep.subr.mxu0 0.0
    %145 = vmatpush1.msra.mxu0 %v128
    %146 = vmatprep.subr.mxu0 0.0
    %147 = vmatpush1.msra.mxu0 %v129
    %148 = vmatprep.subr.mxu0 0.0
    %149 = vmatpush1.msra.mxu0 %v130
    %150 = vmatprep.subr.mxu0 0.0
    %151 = vmatpush1.msra.mxu0 %v131
    %152 = vmatprep.subr.mxu0 0.0
    %153 = vmatpush1.msra.mxu0 %v132
    %154 = vmatprep.subr.mxu0 0.0
    %155 = vmatpush1.msra.mxu0 %v133
    %156 = vmatprep.subr.mxu0 0.0
    %157 = vmatpush1.msra.mxu0 %v134
    %158 = vmatprep.subr.mxu0 0.0
    %159 = vmatpush1.msra.mxu0 %v135
    %160 = vmatprep.subr.mxu0 0.0
    %161 = vmatpush1.msra.mxu0 %v136
    %162 = vmatprep.subr.mxu0 0.0
    %163 = vmatpush1.msra.mxu0 %v137
    %164 = vmatprep.subr.mxu0 0.0
    %165 = vmatpush1.msra.mxu0 %v138
    %166 = vmatprep.subr.mxu0 0.0
    %167 = vmatpush1.msra.mxu0 %v139
    %168 = vmatprep.subr.mxu0 0.0
    %169 = vmatpush1.msra.mxu0 %v140
    %170 = vmatprep.subr.mxu0 0.0
    %171 = vmatpush1.msra.mxu0 %v141
    %172 = vmatprep.subr.mxu0 0.0
    %173 = vmatpush1.msra.mxu0 %v142
    %174 = vmatprep.subr.mxu0 0.0
    %175 = vmatpush1.msra.mxu0 %v143
    %176 = vmatprep.subr.mxu0 0.0
    %177 = vmatpush1.msra.mxu0 0.0
    %178 = vmatprep.subr.mxu0 0.0
    %179 = vmatpush1.msra.mxu0 0.0
    %180 = vmatprep.subr.mxu0 0.0
    %181 = vmatpush1.msra.mxu0 0.0
    %182 = vmatprep.subr.mxu0 0.0
    %183 = vmatpush1.msra.mxu0 0.0
    %184 = vmatprep.subr.mxu0 0.0
    %185 = vmatpush1.msra.mxu0 0.0
    %186 = vmatprep.subr.mxu0 0.0
    %187 = vmatpush1.msra.mxu0 0.0
    %188 = vmatprep.subr.mxu0 0.0
    %189 = vmatpush1.msra.mxu0 0.0
    %190 = vmatprep.subr.mxu0 0.0
    %191 = vmatpush1.msra.mxu0 0.0
    %192 = vmatprep.subr.mxu0 0.0
    %193 = vmatpush1.msra.mxu0 0.0
    %194 = vmatprep.subr.mxu0 0.0
    %195 = vmatpush1.msra.mxu0 0.0
    %196 = vmatprep.subr.mxu0 0.0
    %197 = vmatpush1.msra.mxu0 0.0
    %198 = vmatprep.subr.mxu0 0.0
    %199 = vmatpush1.msra.mxu0 0.0
    %200 = vmatprep.subr.mxu0 0.0
    %201 = vmatpush1.msra.mxu0 0.0
    %202 = vmatprep.subr.mxu0 0.0
    %203 = vmatpush1.msra.mxu0 0.0
    %204 = vmatprep.subr.mxu0 0.0
    %205 = vmatpush1.msra.mxu0 0.0
    %206 = vmatprep.subr.mxu0 0.0
    %207 = vmatpush1.msra.mxu0 0.0
    %208 = vmatprep.mubr.f32.mxu0 0.0
    %209 = vmatmul.mubr.f32.gmra.mrb[0].mxu0 %v96
    %v210 = vpop.f32.mrb[0].mxu0
    %v211 = vadd.f32 0.0, %v210
    %v212 = vpop.f32.mrb[0].mxu0
    %213 = vmatprep.mubr.f32.mxu0 0.0
    %214 = vmatmul.mubr.f32.gmra.mrb[0].mxu0 %v97
    %v215 = vpop.f32.mrb[0].mxu0
    %v216 = vadd.f32 0.0, %v215
    %v217 = vpop.f32.mrb[0].mxu0
    %218 = vmatprep.mubr.f32.mxu0 0.0
    %219 = vmatmul.mubr.f32.gmra.mrb[0].mxu0 %v98
    %v220 = vpop.f32.mrb[0].mxu0
    %v221 = vadd.f32 0.0, %v220
    %v222 = vpop.f32.mrb[0].mxu0
    %223 = vmatprep.mubr.f32.mxu0 0.0
    %224 = vmatmul.mubr.f32.gmra.mrb[0].mxu0 %v99
    %v225 = vpop.f32.mrb[0].mxu0
    %v226 = vadd.f32 0.0, %v225
    %v227 = vpop.f32.mrb[0].mxu0
    %228 = vmatprep.mubr.f32.mxu0 0.0
    %229 = vmatmul.mubr.f32.gmra.mrb[0].mxu0 %v100
    %v230 = vpop.f32.mrb[0].mxu0
    %v231 = vadd.f32 0.0, %v230
    %v232 = vpop.f32.mrb[0].mxu0
    %233 = vmatprep.mubr.f32.mxu0 0.0
    %234 = vmatmul.mubr.f32.gmra.mrb[0].mxu0 %v101
    %v235 = vpop.f32.mrb[0].mxu0
    %v236 = vadd.f32 0.0, %v235
    %v237 = vpop.f32.mrb[0].mxu0
    %238 = vmatprep.mubr.f32.mxu0 0.0
    %239 = vmatmul.mubr.f32.gmra.mrb[0].mxu0 %v102
    %v240 = vpop.f32.mrb[0].mxu0
    %v241 = vadd.f32 0.0, %v240
    %v242 = vpop.f32.mrb[0].mxu0
    %243 = vmatprep.mubr.f32.mxu0 0.0
    %244 = vmatmul.mubr.f32.gmra.mrb[0].mxu0 %v103
    %v245 = vpop.f32.mrb[0].mxu0
    %v246 = vadd.f32 0.0, %v245
    %v247 = vpop.f32.mrb[0].mxu0
    %248 = vmatprep.mubr.f32.mxu0 0.0
    %249 = vmatmul.mubr.f32.gmra.mrb[0].mxu0 %v104
    %v250 = vpop.f32.mrb[0].mxu0
    %v251 = vadd.f32 0.0, %v250
    %v252 = vpop.f32.mrb[0].mxu0
    %253 = vmatprep.mubr.f32.mxu0 0.0
    %254 = vmatmul.mubr.f32.gmra.mrb[0].mxu0 %v105
    %v255 = vpop.f32.mrb[0].mxu0
    %v256 = vadd.f32 0.0, %v255
    %v257 = vpop.f32.mrb[0].mxu0
    %258 = vmatprep.mubr.f32.mxu0 0.0
    %259 = vmatmul.mubr.f32.gmra.mrb[0].mxu0 %v106
    %v260 = vpop.f32.mrb[0].mxu0
    %v261 = vadd.f32 0.0, %v260
    %v262 = vpop.f32.mrb[0].mxu0
    %263 = vmatprep.mubr.f32.mxu0 0.0
    %264 = vmatmul.mubr.f32.gmra.mrb[0].mxu0 %v107
    %v265 = vpop.f32.mrb[0].mxu0
    %v266 = vadd.f32 0.0, %v265
    %v267 = vpop.f32.mrb[0].mxu0
    %268 = vmatprep.mubr.f32.mxu0 0.0
    %269 = vmatmul.mubr.f32.gmra.mrb[0].mxu0 %v108
    %v270 = vpop.f32.mrb[0].mxu0
    %v271 = vadd.f32 0.0, %v270
    %v272 = vpop.f32.mrb[0].mxu0
    %273 = vmatprep.mubr.f32.mxu0 0.0
    %274 = vmatmul.mubr.f32.gmra.mrb[0].mxu0 %v109
    %v275 = vpop.f32.mrb[0].mxu0
    %v276 = vadd.f32 0.0, %v275
    %v277 = vpop.f32.mrb[0].mxu0
    %278 = vmatprep.mubr.f32.mxu0 0.0
    %279 = vmatmul.mubr.f32.gmra.mrb[0].mxu0 %v110
    %v280 = vpop.f32.mrb[0].mxu0
    %v281 = vadd.f32 0.0, %v280
    %v282 = vpop.f32.mrb[0].mxu0
    %283 = vmatprep.mubr.f32.mxu0 0.0
    %284 = vmatmul.mubr.f32.gmra.mrb[0].mxu0 %v111
    %v285 = vpop.f32.mrb[0].mxu0
    %v286 = vadd.f32 0.0, %v285
    %v287 = vpop.f32.mrb[0].mxu0
    %288 = vdwg.mxu0
    %v289 = vadd.f32 %v112, %v211
    %v290 = vadd.f32 %v113, %v216
    %v291 = vadd.f32 %v114, %v221
    %v292 = vadd.f32 %v115, %v226
    %v293 = vadd.f32 %v116, %v231
    %v294 = vadd.f32 %v117, %v236
    %v295 = vadd.f32 %v118, %v241
    %v296 = vadd.f32 %v119, %v246
    %v297 = vadd.f32 %v120, %v251
    %v298 = vadd.f32 %v121, %v256
    %v299 = vadd.f32 %v122, %v261
    %v300 = vadd.f32 %v123, %v266
    %v301 = vadd.f32 %v124, %v271
    %v302 = vadd.f32 %v125, %v276
    %v303 = vadd.f32 %v126, %v281
    %v304 = vadd.f32 %v127, %v286
    %305 = vst [vmem:[#allocation2] sm:$0xff] %v289
    %306 = vst [vmem:[#allocation2 + $0x8] sm:$0xff] %v290
    %307 = vst [vmem:[#allocation2 + $0x10] sm:$0xff] %v291
    %308 = vst [vmem:[#allocation2 + $0x18] sm:$0xff] %v292
    %309 = vst [vmem:[#allocation2 + $0x20] sm:$0xff] %v293
    %310 = vst [vmem:[#allocation2 + $0x28] sm:$0xff] %v294
    %311 = vst [vmem:[#allocation2 + $0x30] sm:$0xff] %v295
    %312 = vst [vmem:[#allocation2 + $0x38] sm:$0xff] %v296
    %313 = vst [vmem:[#allocation2 + $0x40] sm:$0xff] %v297
    %314 = vst [vmem:[#allocation2 + $0x48] sm:$0xff] %v298
    %315 = vst [vmem:[#allocation2 + $0x50] sm:$0xff] %v299
    %316 = vst [vmem:[#allocation2 + $0x58] sm:$0xff] %v300
    %317 = vst [vmem:[#allocation2 + $0x60] sm:$0xff] %v301
    %318 = vst [vmem:[#allocation2 + $0x68] sm:$0xff] %v302
    %319 = vst [vmem:[#allocation2 + $0x70] sm:$0xff] %v303
    %320 = vst [vmem:[#allocation2 + $0x78] sm:$0xff] %v304
    // Predicated region
    $region30: #{network_block_forward.7} parent=1 // pred_check
      %p321 = pneg %p60
    $region31: #{network_block_forward.7} parent=1 // pred_check_branch
      %323 = sbr.rel (%p321) target = $region33
    $region32: #{network_block_forward.7} parent=1 // pred_region
      %v324 = vld [vmem:[#allocation2] sm:$0xff]
      %v325 = vld [vmem:[#allocation2 + $0x8] sm:$0xff]
      %v326 = vld [vmem:[#allocation2 + $0x10] sm:$0xff]
      %v327 = vld [vmem:[#allocation2 + $0x18] sm:$0xff]
      %v328 = vld [vmem:[#allocation2 + $0x20] sm:$0xff]
      %v329 = vld [vmem:[#allocation2 + $0x28] sm:$0xff]
      %v330 = vld [vmem:[#allocation2 + $0x30] sm:$0xff]
      %v331 = vld [vmem:[#allocation2 + $0x38] sm:$0xff]
      %v332 = vld [vmem:[#allocation2 + $0x40] sm:$0xff]
      %v333 = vld [vmem:[#allocation2 + $0x48] sm:$0xff]
      %v334 = vld [vmem:[#allocation2 + $0x50] sm:$0xff]
      %v335 = vld [vmem:[#allocation2 + $0x58] sm:$0xff]
      %v336 = vld [vmem:[#allocation2 + $0x60] sm:$0xff]
      %v337 = vld [vmem:[#allocation2 + $0x68] sm:$0xff]
      %v338 = vld [vmem:[#allocation2 + $0x70] sm:$0xff]
      %v339 = vld [vmem:[#allocation2 + $0x78] sm:$0xff]
      %340 = vst [vmem:[#allocation9] sm:$0xff] %v324
      %341 = vst [vmem:[#allocation9 + $0x8] sm:$0xff] %v325
      %342 = vst [vmem:[#allocation9 + $0x10] sm:$0xff] %v326
      %343 = vst [vmem:[#allocation9 + $0x18] sm:$0xff] %v327
      %344 = vst [vmem:[#allocation9 + $0x20] sm:$0xff] %v328
      %345 = vst [vmem:[#allocation9 + $0x28] sm:$0xff] %v329
      %346 = vst [vmem:[#allocation9 + $0x30] sm:$0xff] %v330
      %347 = vst [vmem:[#allocation9 + $0x38] sm:$0xff] %v331
      %348 = vst [vmem:[#allocation9 + $0x40] sm:$0xff] %v332
      %349 = vst [vmem:[#allocation9 + $0x48] sm:$0xff] %v333
      %350 = vst [vmem:[#allocation9 + $0x50] sm:$0xff] %v334
      %351 = vst [vmem:[#allocation9 + $0x58] sm:$0xff] %v335
      %352 = vst [vmem:[#allocation9 + $0x60] sm:$0xff] %v336
      %353 = vst [vmem:[#allocation9 + $0x68] sm:$0xff] %v337
      %354 = vst [vmem:[#allocation9 + $0x70] sm:$0xff] %v338
      %355 = vst [vmem:[#allocation9 + $0x78] sm:$0xff] %v339
      %v356 = vadd.f32 %v324, %v325
      %v357 = vadd.f32 %v356, %v326
      %v358 = vadd.f32 %v357, %v327
      %v359 = vadd.f32 %v358, %v328
      %v360 = vadd.f32 %v359, %v329
      %v361 = vadd.f32 %v360, %v330
      %v362 = vadd.f32 %v361, %v331
      %v363 = vadd.f32 %v362, %v332
      %v364 = vadd.f32 %v363, %v333
      %v365 = vadd.f32 %v364, %v334
      %v366 = vadd.f32 %v365, %v335
      %v367 = vadd.f32 %v366, %v336
      %v368 = vadd.f32 %v367, %v337
      %v369 = vadd.f32 %v368, %v338
      %v370 = vadd.f32 %v369, %v339
      %v371 = vrot.slane %v370, 4
      %v372 = vadd.f32 %v370, %v371
      %v373 = vrot.slane %v372, 2
      %v374 = vadd.f32 %v372, %v373
      %v375 = vrot.slane %v374, 1
      %v376 = vadd.f32 %v374, %v375
      %377 = vst [vmem:[#allocation10] sm:$0x1] %v376
      %v378 = vmul.f32 %v324, %v324
      %v379 = vmul.f32 %v325, %v325
      %v380 = vmul.f32 %v326, %v326
      %v381 = vmul.f32 %v327, %v327
      %v382 = vmul.f32 %v328, %v328
      %v383 = vmul.f32 %v329, %v329
      %v384 = vmul.f32 %v330, %v330
      %v385 = vmul.f32 %v331, %v331
      %v386 = vmul.f32 %v332, %v332
      %v387 = vmul.f32 %v333, %v333
      %v388 = vmul.f32 %v334, %v334
      %v389 = vmul.f32 %v335, %v335
      %v390 = vmul.f32 %v336, %v336
      %v391 = vmul.f32 %v337, %v337
      %v392 = vmul.f32 %v338, %v338
      %v393 = vmul.f32 %v339, %v339
      %v394 = vadd.f32 %v378, %v379
      %v395 = vadd.f32 %v394, %v380
      %v396 = vadd.f32 %v395, %v381
      %v397 = vadd.f32 %v396, %v382
      %v398 = vadd.f32 %v397, %v383
      %v399 = vadd.f32 %v398, %v384
      %v400 = vadd.f32 %v399, %v385
      %v401 = vadd.f32 %v400, %v386
      %v402 = vadd.f32 %v401, %v387
      %v403 = vadd.f32 %v402, %v388
      %v404 = vadd.f32 %v403, %v389
      %v405 = vadd.f32 %v404, %v390
      %v406 = vadd.f32 %v405, %v391
      %v407 = vadd.f32 %v406, %v392
      %v408 = vadd.f32 %v407, %v393
      %v409 = vrot.slane %v408, 4
      %v410 = vadd.f32 %v408, %v409
      %v411 = vrot.slane %v410, 2
      %v412 = vadd.f32 %v410, %v411
      %v413 = vrot.slane %v412, 1
      %v414 = vadd.f32 %v412, %v413
      %415 = vst [vmem:[#allocation12] sm:$0x1] %v414
    $region33: #{network_block_forward.7} parent=1 // pred_fallthru
      _
    // Predicated region
    $region34: #{network_block_forward.7} parent=1 // pred_check
      _
    $region35: #{network_block_forward.7} parent=1 // pred_check_branch
      %417 = sbr.rel (0) target = $region37
    $region36: #{network_block_forward.7} parent=1 // pred_region
      %s419 = ssub.s32 2048, 2048
      %420 = vsyncadd [#allocation5], %s419
      %s421 = sshll.u32 [#allocation9], 4
      %s422 = int_to_ptr.vmem [resolvable:$true] %s421
      %427 = dma.vmem_to_hbm [thread:$0]  %s422, 2048, %s3, [#allocation5], 128, 128, 8
    $region37: #{network_block_forward.7} parent=1 // pred_fallthru
      _
    // Predicated region
    $region38: #{network_block_forward.7} parent=1 // pred_check
      _
    $region39: #{network_block_forward.7} parent=1 // pred_check_branch
      %429 = sbr.rel (0) target = $region41
    $region40: #{network_block_forward.7} parent=1 // pred_region
      %s431 = ssub.s32 16, 16
      %432 = vsyncadd [#allocation11], %s431
      %s434 = sshll.u32 [#allocation10], 4
      %s435 = int_to_ptr.vmem [resolvable:$true] %s434
      %437 = dma.vmem_to_hbm [thread:$0]  %s435, 16, %s4, [#allocation11]
    $region41: #{network_block_forward.7} parent=1 // pred_fallthru
      _
    // Predicated region
    $region42: #{network_block_forward.7} parent=1 // pred_check
      _
    $region43: #{network_block_forward.7} parent=1 // pred_check_branch
      %439 = sbr.rel (0) target = $region45
    $region44: #{network_block_forward.7} parent=1 // pred_region
      %s441 = ssub.s32 16, 16
      %442 = vsyncadd [#allocation11], %s441
      %s444 = sshll.u32 [#allocation12], 4
      %s445 = int_to_ptr.vmem [resolvable:$true] %s444
      %447 = dma.vmem_to_hbm [thread:$0]  %s445, 16, %s5, [#allocation11]
    $region45: #{network_block_forward.7} parent=1 // pred_fallthru
      _
    // Predicated region
    $region46: #{network_block_forward.7} parent=1 // pred_check
      _
    $region47: #{network_block_forward.7} parent=1 // pred_check_branch
      %449 = sbr.rel (0) target = $region49
    $region48: #{network_block_forward.7} parent=1 // pred_region
      %450 = dma.done [#allocation5], 2048
    $region49: #{network_block_forward.7} parent=1 // pred_fallthru
      _
    // Predicated region
    $region50: #{network_block_forward.7} parent=1 // pred_check
      _
    $region51: #{network_block_forward.7} parent=1 // pred_check_branch
      %452 = sbr.rel (0) target = $region53
    $region52: #{network_block_forward.7} parent=1 // pred_region
      %453 = dma.done [#allocation11], 16
    $region53: #{network_block_forward.7} parent=1 // pred_fallthru
      _
    // Predicated region
    $region54: #{network_block_forward.7} parent=1 // pred_check
      _
    $region55: #{network_block_forward.7} parent=1 // pred_check_branch
      %455 = sbr.rel (0) target = $region57
    $region56: #{network_block_forward.7} parent=1 // pred_region
      %456 = dma.done [#allocation11], 16
    $region57: #{network_block_forward.7} parent=1 // pred_fallthru
      _
    %457 = vsyncpa [#allocation4], 1
    %458 = vsyncpa [#allocation7], 1
    %459 = vsyncpa [#allocation5], 1
    %460 = vsyncpa [#allocation11], 1

// kernel: network_block_forward.6
$region0: #{network_block_forward.6}
  #allocation0 [shape = 'u32[]', space=smem, size = 0x4, offset = 0x4, fixed_abs, tag = 'smem constant byte address 0x4 - core index']
  #allocation1 [shape = 'u32[144,128]{1,0:T(1,128)}', space=vmem, size = 0x12000, scoped, tag = 'internal scratch']
  #allocation2 [shape = 'f32[128,128]{1,0:T(8,128)}', space=vmem, size = 0x10000, scoped, tag = 'scratch operand']
  #allocation3 [shape = 'f32[128,128]{1,0:T(8,128)}', space=vmem, size = 0x10000, scoped, tag = 'scratch operand']
  %s0 = inlined_call_operand.hbm [shape: f32[128,128], index: 0, kind: input, shape index: {}]
  %s1 = inlined_call_operand.hbm [shape: f32[128,128], index: 1, kind: input, shape index: {}]
  %s2 = inlined_call_operand.hbm [shape: f32[128,128], index: 2, kind: input, shape index: {}]
  %s3 = inlined_call_operand.hbm [shape: f32[128,128], index: 3, kind: output, shape index: {0}]
  %s4 = inlined_call_operand.hbm [shape: f32[128,128], index: 4, kind: output, shape index: {1}]
  %s5 = inlined_call_operand.hbm [shape: f32[1,1,128], index: 5, kind: output, shape index: {2}]
  %s6 = inlined_call_operand.hbm [shape: f32[1,1,128], index: 6, kind: output, shape index: {3}]
  %7 = xla_tuple %s3, %s4, %s5, %s6
  %s8 = sld [smem:[#allocation0]]
  $region66: #{network_block_forward.6} parent=0
    _
  %s10 = ssub.s32 1, %s8
  %s11 = scalar_select 0, %s10, %s8
  $region1: #{network_block_forward.6} parent=0
    #allocation4 [shape = 'u8[65536]{0}', space=vmem, size = 0x10000, scoped, tag = 'input window, operand 0, single buffered']
    #allocation5 [shape = 's32[1]{0}', space=sflag, size = 0x4, scoped, tag = 'scoped memory for network_block_forward.6']
    #allocation6 [shape = 's32[1]{0}', space=sflag, size = 0x4, scoped, tag = 'scoped memory for network_block_forward.6']
    #allocation7 [shape = 'u8[65536]{0}', space=vmem, size = 0x10000, scoped, tag = 'input window, operand 1, single buffered']
    #allocation8 [shape = 's32[1]{0}', space=sflag, size = 0x4, scoped, tag = 'scoped memory for network_block_forward.6']
    #allocation9 [shape = 'u8[65536]{0}', space=vmem, size = 0x10000, scoped, tag = 'input window, operand 2, single buffered']
    #allocation10 [shape = 'u8[65536]{0}', space=vmem, size = 0x10000, scoped, tag = 'output window, operand 0, single buffered']
    #allocation11 [shape = 'u8[65536]{0}', space=vmem, size = 0x10000, scoped, tag = 'output window, operand 1, single buffered']
    #allocation12 [shape = 's32[1]{0}', space=sflag, size = 0x4, scoped, tag = 'scoped memory for network_block_forward.6']
    #allocation13 [shape = 'u8[512]{0}', space=vmem, size = 0x400, scoped, tag = 'output window, operand 2, single buffered']
    #allocation14 [shape = 'u8[512]{0}', space=vmem, size = 0x400, scoped, tag = 'output window, operand 3, single buffered']
    #allocation15 [shape = 's32[1]{0}', space=sflag, size = 0x4, scoped, tag = 'scoped memory for network_block_forward.6']
    %12 = vsyncpa [#allocation5], 0
    %13 = vsyncpa [#allocation8], 0
    %14 = vsyncpa [#allocation6], 0
    %15 = vsyncpa [#allocation12], 0
    %16 = vsyncpa [#allocation15], 0
    // Predicated region
    $region2: #{network_block_forward.6} parent=1 // pred_check
      _
    $region3: #{network_block_forward.6} parent=1 // pred_check_branch
      %18 = sbr.rel (0) target = $region5
    $region4: #{network_block_forward.6} parent=1 // pred_region
      %s20 = ssub.s32 2048, 2048
      %21 = vsyncadd [#allocation5], %s20
      %s22 = sshll.u32 [#allocation4], 4
      %s23 = int_to_ptr.vmem [resolvable:$true] %s22
      %28 = dma.hbm_to_vmem [thread:$0]  %s0, 2048, %s23, [#allocation5], 128, 128, 8
    $region5: #{network_block_forward.6} parent=1 // pred_fallthru
      _
    // Predicated region
    $region6: #{network_block_forward.6} parent=1 // pred_check
      _
    $region7: #{network_block_forward.6} parent=1 // pred_check_branch
      %30 = sbr.rel (0) target = $region9
    $region8: #{network_block_forward.6} parent=1 // pred_region
      %s32 = ssub.s32 2048, 2048
      %33 = vsyncadd [#allocation8], %s32
      %s34 = sshll.u32 [#allocation7], 4
      %s35 = int_to_ptr.vmem [resolvable:$true] %s34
      %40 = dma.hbm_to_vmem [thread:$0]  %s1, 2048, %s35, [#allocation8], 128, 128, 8
    $region9: #{network_block_forward.6} parent=1 // pred_fallthru
      _
    // Predicated region
    $region10: #{network_block_forward.6} parent=1 // pred_check
      _
    $region11: #{network_block_forward.6} parent=1 // pred_check_branch
      %42 = sbr.rel (0) target = $region13
    $region12: #{network_block_forward.6} parent=1 // pred_region
      %s44 = ssub.s32 2048, 2048
      %45 = vsyncadd [#allocation8], %s44
      %s46 = sshll.u32 [#allocation9], 4
      %s47 = int_to_ptr.vmem [resolvable:$true] %s46
      %52 = dma.hbm_to_vmem [thread:$0]  %s2, 2048, %s47, [#allocation8], 128, 128, 8
    $region13: #{network_block_forward.6} parent=1 // pred_fallthru
      _
    // Predicated region
    $region14: #{network_block_forward.6} parent=1 // pred_check
      _
    $region15: #{network_block_forward.6} parent=1 // pred_check_branch
      %54 = sbr.rel (0) target = $region17
    $region16: #{network_block_forward.6} parent=1 // pred_region
      %55 = dma.done [#allocation5], 2048
    $region17: #{network_block_forward.6} parent=1 // pred_fallthru
      _
    // Predicated region
    $region18: #{network_block_forward.6} parent=1 // pred_check
      _
    $region19: #{network_block_forward.6} parent=1 // pred_check_branch
      %57 = sbr.rel (0) target = $region21
    $region20: #{network_block_forward.6} parent=1 // pred_region
      %58 = dma.done [#allocation8], 2048
    $region21: #{network_block_forward.6} parent=1 // pred_fallthru
      _
    // Predicated region
    $region22: #{network_block_forward.6} parent=1 // pred_check
      _
    $region23: #{network_block_forward.6} parent=1 // pred_check_branch
      %60 = sbr.rel (0) target = $region25
    $region24: #{network_block_forward.6} parent=1 // pred_region
      %61 = dma.done [#allocation8], 2048
    $region25: #{network_block_forward.6} parent=1 // pred_fallthru
      _
    %p62 = scmp.eq.s32.totalorder 0, 0
    // Predicated region
    $region26: #{network_block_forward.6} parent=1 // pred_check
      %p63 = pneg %p62
    $region27: #{network_block_forward.6} parent=1 // pred_check_branch
      %65 = sbr.rel (%p63) target = $region29
    $region28: #{network_block_forward.6} parent=1 // pred_region
      %66 = vst [vmem:[#allocation2] sm:$0xff] 0.0
      %67 = vst [vmem:[#allocation2 + $0x8] sm:$0xff] 0.0
      %68 = vst [vmem:[#allocation2 + $0x10] sm:$0xff] 0.0
      %69 = vst [vmem:[#allocation2 + $0x18] sm:$0xff] 0.0
      %70 = vst [vmem:[#allocation2 + $0x20] sm:$0xff] 0.0
      %71 = vst [vmem:[#allocation2 + $0x28] sm:$0xff] 0.0
      %72 = vst [vmem:[#allocation2 + $0x30] sm:$0xff] 0.0
      %73 = vst [vmem:[#allocation2 + $0x38] sm:$0xff] 0.0
      %74 = vst [vmem:[#allocation2 + $0x40] sm:$0xff] 0.0
      %75 = vst [vmem:[#allocation2 + $0x48] sm:$0xff] 0.0
      %76 = vst [vmem:[#allocation2 + $0x50] sm:$0xff] 0.0
      %77 = vst [vmem:[#allocation2 + $0x58] sm:$0xff] 0.0
      %78 = vst [vmem:[#allocation2 + $0x60] sm:$0xff] 0.0
      %79 = vst [vmem:[#allocation2 + $0x68] sm:$0xff] 0.0
      %80 = vst [vmem:[#allocation2 + $0x70] sm:$0xff] 0.0
      %81 = vst [vmem:[#allocation2 + $0x78] sm:$0xff] 0.0
      %82 = vst [vmem:[#allocation3] sm:$0xff] 0.0
      %83 = vst [vmem:[#allocation3 + $0x8] sm:$0xff] 0.0
      %84 = vst [vmem:[#allocation3 + $0x10] sm:$0xff] 0.0
      %85 = vst [vmem:[#allocation3 + $0x18] sm:$0xff] 0.0
      %86 = vst [vmem:[#allocation3 + $0x20] sm:$0xff] 0.0
      %87 = vst [vmem:[#allocation3 + $0x28] sm:$0xff] 0.0
      %88 = vst [vmem:[#allocation3 + $0x30] sm:$0xff] 0.0
      %89 = vst [vmem:[#allocation3 + $0x38] sm:$0xff] 0.0
      %90 = vst [vmem:[#allocation3 + $0x40] sm:$0xff] 0.0
      %91 = vst [vmem:[#allocation3 + $0x48] sm:$0xff] 0.0
      %92 = vst [vmem:[#allocation3 + $0x50] sm:$0xff] 0.0
      %93 = vst [vmem:[#allocation3 + $0x58] sm:$0xff] 0.0
      %94 = vst [vmem:[#allocation3 + $0x60] sm:$0xff] 0.0
      %95 = vst [vmem:[#allocation3 + $0x68] sm:$0xff] 0.0
      %96 = vst [vmem:[#allocation3 + $0x70] sm:$0xff] 0.0
      %97 = vst [vmem:[#allocation3 + $0x78] sm:$0xff] 0.0
    $region29: #{network_block_forward.6} parent=1 // pred_fallthru
      _
    %v98 = vld [vmem:[#allocation4] sm:$0xff]
    %v99 = vld [vmem:[#allocation4 + $0x8] sm:$0xff]
    %v100 = vld [vmem:[#allocation4 + $0x10] sm:$0xff]
    %v101 = vld [vmem:[#allocation4 + $0x18] sm:$0xff]
    %v102 = vld [vmem:[#allocation4 + $0x20] sm:$0xff]
    %v103 = vld [vmem:[#allocation4 + $0x28] sm:$0xff]
    %v104 = vld [vmem:[#allocation4 + $0x30] sm:$0xff]
    %v105 = vld [vmem:[#allocation4 + $0x38] sm:$0xff]
    %v106 = vld [vmem:[#allocation4 + $0x40] sm:$0xff]
    %v107 = vld [vmem:[#allocation4 + $0x48] sm:$0xff]
    %v108 = vld [vmem:[#allocation4 + $0x50] sm:$0xff]
    %v109 = vld [vmem:[#allocation4 + $0x58] sm:$0xff]
    %v110 = vld [vmem:[#allocation4 + $0x60] sm:$0xff]
    %v111 = vld [vmem:[#allocation4 + $0x68] sm:$0xff]
    %v112 = vld [vmem:[#allocation4 + $0x70] sm:$0xff]
    %v113 = vld [vmem:[#allocation4 + $0x78] sm:$0xff]
    %v114 = vld [vmem:[#allocation2] sm:$0xff]
    %v115 = vld [vmem:[#allocation2 + $0x8] sm:$0xff]
    %v116 = vld [vmem:[#allocation2 + $0x10] sm:$0xff]
    %v117 = vld [vmem:[#allocation2 + $0x18] sm:$0xff]
    %v118 = vld [vmem:[#allocation2 + $0x20] sm:$0xff]
    %v119 = vld [vmem:[#allocation2 + $0x28] sm:$0xff]
    %v120 = vld [vmem:[#allocation2 + $0x30] sm:$0xff]
    %v121 = vld [vmem:[#allocation2 + $0x38] sm:$0xff]
    %v122 = vld [vmem:[#allocation2 + $0x40] sm:$0xff]
    %v123 = vld [vmem:[#allocation2 + $0x48] sm:$0xff]
    %v124 = vld [vmem:[#allocation2 + $0x50] sm:$0xff]
    %v125 = vld [vmem:[#allocation2 + $0x58] sm:$0xff]
    %v126 = vld [vmem:[#allocation2 + $0x60] sm:$0xff]
    %v127 = vld [vmem:[#allocation2 + $0x68] sm:$0xff]
    %v128 = vld [vmem:[#allocation2 + $0x70] sm:$0xff]
    %v129 = vld [vmem:[#allocation2 + $0x78] sm:$0xff]
    %v130 = vld [vmem:[#allocation7] sm:$0xff]
    %v131 = vld [vmem:[#allocation7 + $0x8] sm:$0xff]
    %v132 = vld [vmem:[#allocation7 + $0x10] sm:$0xff]
    %v133 = vld [vmem:[#allocation7 + $0x18] sm:$0xff]
    %v134 = vld [vmem:[#allocation7 + $0x20] sm:$0xff]
    %v135 = vld [vmem:[#allocation7 + $0x28] sm:$0xff]
    %v136 = vld [vmem:[#allocation7 + $0x30] sm:$0xff]
    %v137 = vld [vmem:[#allocation7 + $0x38] sm:$0xff]
    %v138 = vld [vmem:[#allocation7 + $0x40] sm:$0xff]
    %v139 = vld [vmem:[#allocation7 + $0x48] sm:$0xff]
    %v140 = vld [vmem:[#allocation7 + $0x50] sm:$0xff]
    %v141 = vld [vmem:[#allocation7 + $0x58] sm:$0xff]
    %v142 = vld [vmem:[#allocation7 + $0x60] sm:$0xff]
    %v143 = vld [vmem:[#allocation7 + $0x68] sm:$0xff]
    %v144 = vld [vmem:[#allocation7 + $0x70] sm:$0xff]
    %v145 = vld [vmem:[#allocation7 + $0x78] sm:$0xff]
    %146 = vmatprep.subr.mxu0 0.0
    %147 = vmatpush1.msra.mxu0 %v130
    %148 = vmatprep.subr.mxu0 0.0
    %149 = vmatpush1.msra.mxu0 %v131
    %150 = vmatprep.subr.mxu0 0.0
    %151 = vmatpush1.msra.mxu0 %v132
    %152 = vmatprep.subr.mxu0 0.0
    %153 = vmatpush1.msra.mxu0 %v133
    %154 = vmatprep.subr.mxu0 0.0
    %155 = vmatpush1.msra.mxu0 %v134
    %156 = vmatprep.subr.mxu0 0.0
    %157 = vmatpush1.msra.mxu0 %v135
    %158 = vmatprep.subr.mxu0 0.0
    %159 = vmatpush1.msra.mxu0 %v136
    %160 = vmatprep.subr.mxu0 0.0
    %161 = vmatpush1.msra.mxu0 %v137
    %162 = vmatprep.subr.mxu0 0.0
    %163 = vmatpush1.msra.mxu0 %v138
    %164 = vmatprep.subr.mxu0 0.0
    %165 = vmatpush1.msra.mxu0 %v139
    %166 = vmatprep.subr.mxu0 0.0
    %167 = vmatpush1.msra.mxu0 %v140
    %168 = vmatprep.subr.mxu0 0.0
    %169 = vmatpush1.msra.mxu0 %v141
    %170 = vmatprep.subr.mxu0 0.0
    %171 = vmatpush1.msra.mxu0 %v142
    %172 = vmatprep.subr.mxu0 0.0
    %173 = vmatpush1.msra.mxu0 %v143
    %174 = vmatprep.subr.mxu0 0.0
    %175 = vmatpush1.msra.mxu0 %v144
    %176 = vmatprep.subr.mxu0 0.0
    %177 = vmatpush1.msra.mxu0 %v145
    %178 = vmatprep.subr.mxu0 0.0
    %179 = vmatpush1.msra.mxu0 0.0
    %180 = vmatprep.subr.mxu0 0.0
    %181 = vmatpush1.msra.mxu0 0.0
    %182 = vmatprep.subr.mxu0 0.0
    %183 = vmatpush1.msra.mxu0 0.0
    %184 = vmatprep.subr.mxu0 0.0
    %185 = vmatpush1.msra.mxu0 0.0
    %186 = vmatprep.subr.mxu0 0.0
    %187 = vmatpush1.msra.mxu0 0.0
    %188 = vmatprep.subr.mxu0 0.0
    %189 = vmatpush1.msra.mxu0 0.0
    %190 = vmatprep.subr.mxu0 0.0
    %191 = vmatpush1.msra.mxu0 0.0
    %192 = vmatprep.subr.mxu0 0.0
    %193 = vmatpush1.msra.mxu0 0.0
    %194 = vmatprep.subr.mxu0 0.0
    %195 = vmatpush1.msra.mxu0 0.0
    %196 = vmatprep.subr.mxu0 0.0
    %197 = vmatpush1.msra.mxu0 0.0
    %198 = vmatprep.subr.mxu0 0.0
    %199 = vmatpush1.msra.mxu0 0.0
    %200 = vmatprep.subr.mxu0 0.0
    %201 = vmatpush1.msra.mxu0 0.0
    %202 = vmatprep.subr.mxu0 0.0
    %203 = vmatpush1.msra.mxu0 0.0
    %204 = vmatprep.subr.mxu0 0.0
    %205 = vmatpush1.msra.mxu0 0.0
    %206 = vmatprep.subr.mxu0 0.0
    %207 = vmatpush1.msra.mxu0 0.0
    %208 = vmatprep.subr.mxu0 0.0
    %209 = vmatpush1.msra.mxu0 0.0
    %210 = vmatprep.mubr.f32.mxu0 0.0
    %211 = vmatmul.mubr.f32.gmra.mrb[0].mxu0 %v98
    %v212 = vpop.f32.mrb[0].mxu0
    %v213 = vadd.f32 0.0, %v212
    %v214 = vpop.f32.mrb[0].mxu0
    %215 = vmatprep.mubr.f32.mxu0 0.0
    %216 = vmatmul.mubr.f32.gmra.mrb[0].mxu0 %v99
    %v217 = vpop.f32.mrb[0].mxu0
    %v218 = vadd.f32 0.0, %v217
    %v219 = vpop.f32.mrb[0].mxu0
    %220 = vmatprep.mubr.f32.mxu0 0.0
    %221 = vmatmul.mubr.f32.gmra.mrb[0].mxu0 %v100
    %v222 = vpop.f32.mrb[0].mxu0
    %v223 = vadd.f32 0.0, %v222
    %v224 = vpop.f32.mrb[0].mxu0
    %225 = vmatprep.mubr.f32.mxu0 0.0
    %226 = vmatmul.mubr.f32.gmra.mrb[0].mxu0 %v101
    %v227 = vpop.f32.mrb[0].mxu0
    %v228 = vadd.f32 0.0, %v227
    %v229 = vpop.f32.mrb[0].mxu0
    %230 = vmatprep.mubr.f32.mxu0 0.0
    %231 = vmatmul.mubr.f32.gmra.mrb[0].mxu0 %v102
    %v232 = vpop.f32.mrb[0].mxu0
    %v233 = vadd.f32 0.0, %v232
    %v234 = vpop.f32.mrb[0].mxu0
    %235 = vmatprep.mubr.f32.mxu0 0.0
    %236 = vmatmul.mubr.f32.gmra.mrb[0].mxu0 %v103
    %v237 = vpop.f32.mrb[0].mxu0
    %v238 = vadd.f32 0.0, %v237
    %v239 = vpop.f32.mrb[0].mxu0
    %240 = vmatprep.mubr.f32.mxu0 0.0
    %241 = vmatmul.mubr.f32.gmra.mrb[0].mxu0 %v104
    %v242 = vpop.f32.mrb[0].mxu0
    %v243 = vadd.f32 0.0, %v242
    %v244 = vpop.f32.mrb[0].mxu0
    %245 = vmatprep.mubr.f32.mxu0 0.0
    %246 = vmatmul.mubr.f32.gmra.mrb[0].mxu0 %v105
    %v247 = vpop.f32.mrb[0].mxu0
    %v248 = vadd.f32 0.0, %v247
    %v249 = vpop.f32.mrb[0].mxu0
    %250 = vmatprep.mubr.f32.mxu0 0.0
    %251 = vmatmul.mubr.f32.gmra.mrb[0].mxu0 %v106
    %v252 = vpop.f32.mrb[0].mxu0
    %v253 = vadd.f32 0.0, %v252
    %v254 = vpop.f32.mrb[0].mxu0
    %255 = vmatprep.mubr.f32.mxu0 0.0
    %256 = vmatmul.mubr.f32.gmra.mrb[0].mxu0 %v107
    %v257 = vpop.f32.mrb[0].mxu0
    %v258 = vadd.f32 0.0, %v257
    %v259 = vpop.f32.mrb[0].mxu0
    %260 = vmatprep.mubr.f32.mxu0 0.0
    %261 = vmatmul.mubr.f32.gmra.mrb[0].mxu0 %v108
    %v262 = vpop.f32.mrb[0].mxu0
    %v263 = vadd.f32 0.0, %v262
    %v264 = vpop.f32.mrb[0].mxu0
    %265 = vmatprep.mubr.f32.mxu0 0.0
    %266 = vmatmul.mubr.f32.gmra.mrb[0].mxu0 %v109
    %v267 = vpop.f32.mrb[0].mxu0
    %v268 = vadd.f32 0.0, %v267
    %v269 = vpop.f32.mrb[0].mxu0
    %270 = vmatprep.mubr.f32.mxu0 0.0
    %271 = vmatmul.mubr.f32.gmra.mrb[0].mxu0 %v110
    %v272 = vpop.f32.mrb[0].mxu0
    %v273 = vadd.f32 0.0, %v272
    %v274 = vpop.f32.mrb[0].mxu0
    %275 = vmatprep.mubr.f32.mxu0 0.0
    %276 = vmatmul.mubr.f32.gmra.mrb[0].mxu0 %v111
    %v277 = vpop.f32.mrb[0].mxu0
    %v278 = vadd.f32 0.0, %v277
    %v279 = vpop.f32.mrb[0].mxu0
    %280 = vmatprep.mubr.f32.mxu0 0.0
    %281 = vmatmul.mubr.f32.gmra.mrb[0].mxu0 %v112
    %v282 = vpop.f32.mrb[0].mxu0
    %v283 = vadd.f32 0.0, %v282
    %v284 = vpop.f32.mrb[0].mxu0
    %285 = vmatprep.mubr.f32.mxu0 0.0
    %286 = vmatmul.mubr.f32.gmra.mrb[0].mxu0 %v113
    %v287 = vpop.f32.mrb[0].mxu0
    %v288 = vadd.f32 0.0, %v287
    %v289 = vpop.f32.mrb[0].mxu0
    %290 = vdwg.mxu0
    %v291 = vadd.f32 %v114, %v213
    %v292 = vadd.f32 %v115, %v218
    %v293 = vadd.f32 %v116, %v223
    %v294 = vadd.f32 %v117, %v228
    %v295 = vadd.f32 %v118, %v233
    %v296 = vadd.f32 %v119, %v238
    %v297 = vadd.f32 %v120, %v243
    %v298 = vadd.f32 %v121, %v248
    %v299 = vadd.f32 %v122, %v253
    %v300 = vadd.f32 %v123, %v258
    %v301 = vadd.f32 %v124, %v263
    %v302 = vadd.f32 %v125, %v268
    %v303 = vadd.f32 %v126, %v273
    %v304 = vadd.f32 %v127, %v278
    %v305 = vadd.f32 %v128, %v283
    %v306 = vadd.f32 %v129, %v288
    %307 = vst [vmem:[#allocation2] sm:$0xff] %v291
    %308 = vst [vmem:[#allocation2 + $0x8] sm:$0xff] %v292
    %309 = vst [vmem:[#allocation2 + $0x10] sm:$0xff] %v293
    %310 = vst [vmem:[#allocation2 + $0x18] sm:$0xff] %v294
    %311 = vst [vmem:[#allocation2 + $0x20] sm:$0xff] %v295
    %312 = vst [vmem:[#allocation2 + $0x28] sm:$0xff] %v296
    %313 = vst [vmem:[#allocation2 + $0x30] sm:$0xff] %v297
    %314 = vst [vmem:[#allocation2 + $0x38] sm:$0xff] %v298
    %315 = vst [vmem:[#allocation2 + $0x40] sm:$0xff] %v299
    %316 = vst [vmem:[#allocation2 + $0x48] sm:$0xff] %v300
    %317 = vst [vmem:[#allocation2 + $0x50] sm:$0xff] %v301
    %318 = vst [vmem:[#allocation2 + $0x58] sm:$0xff] %v302
    %319 = vst [vmem:[#allocation2 + $0x60] sm:$0xff] %v303
    %320 = vst [vmem:[#allocation2 + $0x68] sm:$0xff] %v304
    %321 = vst [vmem:[#allocation2 + $0x70] sm:$0xff] %v305
    %322 = vst [vmem:[#allocation2 + $0x78] sm:$0xff] %v306
    %v323 = vld [vmem:[#allocation3] sm:$0xff]
    %v324 = vld [vmem:[#allocation3 + $0x8] sm:$0xff]
    %v325 = vld [vmem:[#allocation3 + $0x10] sm:$0xff]
    %v326 = vld [vmem:[#allocation3 + $0x18] sm:$0xff]
    %v327 = vld [vmem:[#allocation3 + $0x20] sm:$0xff]
    %v328 = vld [vmem:[#allocation3 + $0x28] sm:$0xff]
    %v329 = vld [vmem:[#allocation3 + $0x30] sm:$0xff]
    %v330 = vld [vmem:[#allocation3 + $0x38] sm:$0xff]
    %v331 = vld [vmem:[#allocation3 + $0x40] sm:$0xff]
    %v332 = vld [vmem:[#allocation3 + $0x48] sm:$0xff]
    %v333 = vld [vmem:[#allocation3 + $0x50] sm:$0xff]
    %v334 = vld [vmem:[#allocation3 + $0x58] sm:$0xff]
    %v335 = vld [vmem:[#allocation3 + $0x60] sm:$0xff]
    %v336 = vld [vmem:[#allocation3 + $0x68] sm:$0xff]
    %v337 = vld [vmem:[#allocation3 + $0x70] sm:$0xff]
    %v338 = vld [vmem:[#allocation3 + $0x78] sm:$0xff]
    %v339 = vld [vmem:[#allocation9] sm:$0xff]
    %v340 = vld [vmem:[#allocation9 + $0x8] sm:$0xff]
    %v341 = vld [vmem:[#allocation9 + $0x10] sm:$0xff]
    %v342 = vld [vmem:[#allocation9 + $0x18] sm:$0xff]
    %v343 = vld [vmem:[#allocation9 + $0x20] sm:$0xff]
    %v344 = vld [vmem:[#allocation9 + $0x28] sm:$0xff]
    %v345 = vld [vmem:[#allocation9 + $0x30] sm:$0xff]
    %v346 = vld [vmem:[#allocation9 + $0x38] sm:$0xff]
    %v347 = vld [vmem:[#allocation9 + $0x40] sm:$0xff]
    %v348 = vld [vmem:[#allocation9 + $0x48] sm:$0xff]
    %v349 = vld [vmem:[#allocation9 + $0x50] sm:$0xff]
    %v350 = vld [vmem:[#allocation9 + $0x58] sm:$0xff]
    %v351 = vld [vmem:[#allocation9 + $0x60] sm:$0xff]
    %v352 = vld [vmem:[#allocation9 + $0x68] sm:$0xff]
    %v353 = vld [vmem:[#allocation9 + $0x70] sm:$0xff]
    %v354 = vld [vmem:[#allocation9 + $0x78] sm:$0xff]
    %355 = vmatprep.subr.mxu0 0.0
    %356 = vmatpush1.msra.mxu0 %v339
    %357 = vmatprep.subr.mxu0 0.0
    %358 = vmatpush1.msra.mxu0 %v340
    %359 = vmatprep.subr.mxu0 0.0
    %360 = vmatpush1.msra.mxu0 %v341
    %361 = vmatprep.subr.mxu0 0.0
    %362 = vmatpush1.msra.mxu0 %v342
    %363 = vmatprep.subr.mxu0 0.0
    %364 = vmatpush1.msra.mxu0 %v343
    %365 = vmatprep.subr.mxu0 0.0
    %366 = vmatpush1.msra.mxu0 %v344
    %367 = vmatprep.subr.mxu0 0.0
    %368 = vmatpush1.msra.mxu0 %v345
    %369 = vmatprep.subr.mxu0 0.0
    %370 = vmatpush1.msra.mxu0 %v346
    %371 = vmatprep.subr.mxu0 0.0
    %372 = vmatpush1.msra.mxu0 %v347
    %373 = vmatprep.subr.mxu0 0.0
    %374 = vmatpush1.msra.mxu0 %v348
    %375 = vmatprep.subr.mxu0 0.0
    %376 = vmatpush1.msra.mxu0 %v349
    %377 = vmatprep.subr.mxu0 0.0
    %378 = vmatpush1.msra.mxu0 %v350
    %379 = vmatprep.subr.mxu0 0.0
    %380 = vmatpush1.msra.mxu0 %v351
    %381 = vmatprep.subr.mxu0 0.0
    %382 = vmatpush1.msra.mxu0 %v352
    %383 = vmatprep.subr.mxu0 0.0
    %384 = vmatpush1.msra.mxu0 %v353
    %385 = vmatprep.subr.mxu0 0.0
    %386 = vmatpush1.msra.mxu0 %v354
    %387 = vmatprep.subr.mxu0 0.0
    %388 = vmatpush1.msra.mxu0 0.0
    %389 = vmatprep.subr.mxu0 0.0
    %390 = vmatpush1.msra.mxu0 0.0
    %391 = vmatprep.subr.mxu0 0.0
    %392 = vmatpush1.msra.mxu0 0.0
    %393 = vmatprep.subr.mxu0 0.0
    %394 = vmatpush1.msra.mxu0 0.0
    %395 = vmatprep.subr.mxu0 0.0
    %396 = vmatpush1.msra.mxu0 0.0
    %397 = vmatprep.subr.mxu0 0.0
    %398 = vmatpush1.msra.mxu0 0.0
    %399 = vmatprep.subr.mxu0 0.0
    %400 = vmatpush1.msra.mxu0 0.0
    %401 = vmatprep.subr.mxu0 0.0
    %402 = vmatpush1.msra.mxu0 0.0
    %403 = vmatprep.subr.mxu0 0.0
    %404 = vmatpush1.msra.mxu0 0.0
    %405 = vmatprep.subr.mxu0 0.0
    %406 = vmatpush1.msra.mxu0 0.0
    %407 = vmatprep.subr.mxu0 0.0
    %408 = vmatpush1.msra.mxu0 0.0
    %409 = vmatprep.subr.mxu0 0.0
    %410 = vmatpush1.msra.mxu0 0.0
    %411 = vmatprep.subr.mxu0 0.0
    %412 = vmatpush1.msra.mxu0 0.0
    %413 = vmatprep.subr.mxu0 0.0
    %414 = vmatpush1.msra.mxu0 0.0
    %415 = vmatprep.subr.mxu0 0.0
    %416 = vmatpush1.msra.mxu0 0.0
    %417 = vmatprep.subr.mxu0 0.0
    %418 = vmatpush1.msra.mxu0 0.0
    %419 = vmatprep.mubr.f32.mxu0 0.0
    %420 = vmatmul.mubr.f32.gmra.mrb[0].mxu0 %v98
    %v421 = vpop.f32.mrb[0].mxu0
    %v422 = vadd.f32 0.0, %v421
    %v423 = vpop.f32.mrb[0].mxu0
    %424 = vmatprep.mubr.f32.mxu0 0.0
    %425 = vmatmul.mubr.f32.gmra.mrb[0].mxu0 %v99
    %v426 = vpop.f32.mrb[0].mxu0
    %v427 = vadd.f32 0.0, %v426
    %v428 = vpop.f32.mrb[0].mxu0
    %429 = vmatprep.mubr.f32.mxu0 0.0
    %430 = vmatmul.mubr.f32.gmra.mrb[0].mxu0 %v100
    %v431 = vpop.f32.mrb[0].mxu0
    %v432 = vadd.f32 0.0, %v431
    %v433 = vpop.f32.mrb[0].mxu0
    %434 = vmatprep.mubr.f32.mxu0 0.0
    %435 = vmatmul.mubr.f32.gmra.mrb[0].mxu0 %v101
    %v436 = vpop.f32.mrb[0].mxu0
    %v437 = vadd.f32 0.0, %v436
    %v438 = vpop.f32.mrb[0].mxu0
    %439 = vmatprep.mubr.f32.mxu0 0.0
    %440 = vmatmul.mubr.f32.gmra.mrb[0].mxu0 %v102
    %v441 = vpop.f32.mrb[0].mxu0
    %v442 = vadd.f32 0.0, %v441
    %v443 = vpop.f32.mrb[0].mxu0
    %444 = vmatprep.mubr.f32.mxu0 0.0
    %445 = vmatmul.mubr.f32.gmra.mrb[0].mxu0 %v103
    %v446 = vpop.f32.mrb[0].mxu0
    %v447 = vadd.f32 0.0, %v446
    %v448 = vpop.f32.mrb[0].mxu0
    %449 = vmatprep.mubr.f32.mxu0 0.0
    %450 = vmatmul.mubr.f32.gmra.mrb[0].mxu0 %v104
    %v451 = vpop.f32.mrb[0].mxu0
    %v452 = vadd.f32 0.0, %v451
    %v453 = vpop.f32.mrb[0].mxu0
    %454 = vmatprep.mubr.f32.mxu0 0.0
    %455 = vmatmul.mubr.f32.gmra.mrb[0].mxu0 %v105
    %v456 = vpop.f32.mrb[0].mxu0
    %v457 = vadd.f32 0.0, %v456
    %v458 = vpop.f32.mrb[0].mxu0
    %459 = vmatprep.mubr.f32.mxu0 0.0
    %460 = vmatmul.mubr.f32.gmra.mrb[0].mxu0 %v106
    %v461 = vpop.f32.mrb[0].mxu0
    %v462 = vadd.f32 0.0, %v461
    %v463 = vpop.f32.mrb[0].mxu0
    %464 = vmatprep.mubr.f32.mxu0 0.0
    %465 = vmatmul.mubr.f32.gmra.mrb[0].mxu0 %v107
    %v466 = vpop.f32.mrb[0].mxu0
    %v467 = vadd.f32 0.0, %v466
    %v468 = vpop.f32.mrb[0].mxu0
    %469 = vmatprep.mubr.f32.mxu0 0.0
    %470 = vmatmul.mubr.f32.gmra.mrb[0].mxu0 %v108
    %v471 = vpop.f32.mrb[0].mxu0
    %v472 = vadd.f32 0.0, %v471
    %v473 = vpop.f32.mrb[0].mxu0
    %474 = vmatprep.mubr.f32.mxu0 0.0
    %475 = vmatmul.mubr.f32.gmra.mrb[0].mxu0 %v109
    %v476 = vpop.f32.mrb[0].mxu0
    %v477 = vadd.f32 0.0, %v476
    %v478 = vpop.f32.mrb[0].mxu0
    %479 = vmatprep.mubr.f32.mxu0 0.0
    %480 = vmatmul.mubr.f32.gmra.mrb[0].mxu0 %v110
    %v481 = vpop.f32.mrb[0].mxu0
    %v482 = vadd.f32 0.0, %v481
    %v483 = vpop.f32.mrb[0].mxu0
    %484 = vmatprep.mubr.f32.mxu0 0.0
    %485 = vmatmul.mubr.f32.gmra.mrb[0].mxu0 %v111
    %v486 = vpop.f32.mrb[0].mxu0
    %v487 = vadd.f32 0.0, %v486
    %v488 = vpop.f32.mrb[0].mxu0
    %489 = vmatprep.mubr.f32.mxu0 0.0
    %490 = vmatmul.mubr.f32.gmra.mrb[0].mxu0 %v112
    %v491 = vpop.f32.mrb[0].mxu0
    %v492 = vadd.f32 0.0, %v491
    %v493 = vpop.f32.mrb[0].mxu0
    %494 = vmatprep.mubr.f32.mxu0 0.0
    %495 = vmatmul.mubr.f32.gmra.mrb[0].mxu0 %v113
    %v496 = vpop.f32.mrb[0].mxu0
    %v497 = vadd.f32 0.0, %v496
    %v498 = vpop.f32.mrb[0].mxu0
    %499 = vdwg.mxu0
    %v500 = vadd.f32 %v323, %v422
    %v501 = vadd.f32 %v324, %v427
    %v502 = vadd.f32 %v325, %v432
    %v503 = vadd.f32 %v326, %v437
    %v504 = vadd.f32 %v327, %v442
    %v505 = vadd.f32 %v328, %v447
    %v506 = vadd.f32 %v329, %v452
    %v507 = vadd.f32 %v330, %v457
    %v508 = vadd.f32 %v331, %v462
    %v509 = vadd.f32 %v332, %v467
    %v510 = vadd.f32 %v333, %v472
    %v511 = vadd.f32 %v334, %v477
    %v512 = vadd.f32 %v335, %v482
    %v513 = vadd.f32 %v336, %v487
    %v514 = vadd.f32 %v337, %v492
    %v515 = vadd.f32 %v338, %v497
    %516 = vst [vmem:[#allocation3] sm:$0xff] %v500
    %517 = vst [vmem:[#allocation3 + $0x8] sm:$0xff] %v501
    %518 = vst [vmem:[#allocation3 + $0x10] sm:$0xff] %v502
    %519 = vst [vmem:[#allocation3 + $0x18] sm:$0xff] %v503
    %520 = vst [vmem:[#allocation3 + $0x20] sm:$0xff] %v504
    %521 = vst [vmem:[#allocation3 + $0x28] sm:$0xff] %v505
    %522 = vst [vmem:[#allocation3 + $0x30] sm:$0xff] %v506
    %523 = vst [vmem:[#allocation3 + $0x38] sm:$0xff] %v507
    %524 = vst [vmem:[#allocation3 + $0x40] sm:$0xff] %v508
    %525 = vst [vmem:[#allocation3 + $0x48] sm:$0xff] %v509
    %526 = vst [vmem:[#allocation3 + $0x50] sm:$0xff] %v510
    %527 = vst [vmem:[#allocation3 + $0x58] sm:$0xff] %v511
    %528 = vst [vmem:[#allocation3 + $0x60] sm:$0xff] %v512
    %529 = vst [vmem:[#allocation3 + $0x68] sm:$0xff] %v513
    %530 = vst [vmem:[#allocation3 + $0x70] sm:$0xff] %v514
    %531 = vst [vmem:[#allocation3 + $0x78] sm:$0xff] %v515
    // Predicated region
    $region30: #{network_block_forward.6} parent=1 // pred_check
      %p532 = pneg %p62
    $region31: #{network_block_forward.6} parent=1 // pred_check_branch
      %534 = sbr.rel (%p532) target = $region33
    $region32: #{network_block_forward.6} parent=1 // pred_region
      %v535 = vld [vmem:[#allocation2] sm:$0xff]
      %v536 = vld [vmem:[#allocation2 + $0x8] sm:$0xff]
      %v537 = vld [vmem:[#allocation2 + $0x10] sm:$0xff]
      %v538 = vld [vmem:[#allocation2 + $0x18] sm:$0xff]
      %v539 = vld [vmem:[#allocation2 + $0x20] sm:$0xff]
      %v540 = vld [vmem:[#allocation2 + $0x28] sm:$0xff]
      %v541 = vld [vmem:[#allocation2 + $0x30] sm:$0xff]
      %v542 = vld [vmem:[#allocation2 + $0x38] sm:$0xff]
      %v543 = vld [vmem:[#allocation2 + $0x40] sm:$0xff]
      %v544 = vld [vmem:[#allocation2 + $0x48] sm:$0xff]
      %v545 = vld [vmem:[#allocation2 + $0x50] sm:$0xff]
      %v546 = vld [vmem:[#allocation2 + $0x58] sm:$0xff]
      %v547 = vld [vmem:[#allocation2 + $0x60] sm:$0xff]
      %v548 = vld [vmem:[#allocation2 + $0x68] sm:$0xff]
      %v549 = vld [vmem:[#allocation2 + $0x70] sm:$0xff]
      %v550 = vld [vmem:[#allocation2 + $0x78] sm:$0xff]
      %551 = vst [vmem:[#allocation10] sm:$0xff] %v535
      %552 = vst [vmem:[#allocation10 + $0x8] sm:$0xff] %v536
      %553 = vst [vmem:[#allocation10 + $0x10] sm:$0xff] %v537
      %554 = vst [vmem:[#allocation10 + $0x18] sm:$0xff] %v538
      %555 = vst [vmem:[#allocation10 + $0x20] sm:$0xff] %v539
      %556 = vst [vmem:[#allocation10 + $0x28] sm:$0xff] %v540
      %557 = vst [vmem:[#allocation10 + $0x30] sm:$0xff] %v541
      %558 = vst [vmem:[#allocation10 + $0x38] sm:$0xff] %v542
      %559 = vst [vmem:[#allocation10 + $0x40] sm:$0xff] %v543
      %560 = vst [vmem:[#allocation10 + $0x48] sm:$0xff] %v544
      %561 = vst [vmem:[#allocation10 + $0x50] sm:$0xff] %v545
      %562 = vst [vmem:[#allocation10 + $0x58] sm:$0xff] %v546
      %563 = vst [vmem:[#allocation10 + $0x60] sm:$0xff] %v547
      %564 = vst [vmem:[#allocation10 + $0x68] sm:$0xff] %v548
      %565 = vst [vmem:[#allocation10 + $0x70] sm:$0xff] %v549
      %566 = vst [vmem:[#allocation10 + $0x78] sm:$0xff] %v550
      %v567 = vadd.f32 %v535, %v536
      %v568 = vadd.f32 %v567, %v537
      %v569 = vadd.f32 %v568, %v538
      %v570 = vadd.f32 %v569, %v539
      %v571 = vadd.f32 %v570, %v540
      %v572 = vadd.f32 %v571, %v541
      %v573 = vadd.f32 %v572, %v542
      %v574 = vadd.f32 %v573, %v543
      %v575 = vadd.f32 %v574, %v544
      %v576 = vadd.f32 %v575, %v545
      %v577 = vadd.f32 %v576, %v546
      %v578 = vadd.f32 %v577, %v547
      %v579 = vadd.f32 %v578, %v548
      %v580 = vadd.f32 %v579, %v549
      %v581 = vadd.f32 %v580, %v550
      %v582 = vrot.slane %v581, 4
      %v583 = vadd.f32 %v581, %v582
      %v584 = vrot.slane %v583, 2
      %v585 = vadd.f32 %v583, %v584
      %v586 = vrot.slane %v585, 1
      %v587 = vadd.f32 %v585, %v586
      %588 = vst [vmem:[#allocation13] sm:$0x1] %v587
      %v589 = vmul.f32 %v535, %v535
      %v590 = vmul.f32 %v536, %v536
      %v591 = vmul.f32 %v537, %v537
      %v592 = vmul.f32 %v538, %v538
      %v593 = vmul.f32 %v539, %v539
      %v594 = vmul.f32 %v540, %v540
      %v595 = vmul.f32 %v541, %v541
      %v596 = vmul.f32 %v542, %v542
      %v597 = vmul.f32 %v543, %v543
      %v598 = vmul.f32 %v544, %v544
      %v599 = vmul.f32 %v545, %v545
      %v600 = vmul.f32 %v546, %v546
      %v601 = vmul.f32 %v547, %v547
      %v602 = vmul.f32 %v548, %v548
      %v603 = vmul.f32 %v549, %v549
      %v604 = vmul.f32 %v550, %v550
      %v605 = vadd.f32 %v589, %v590
      %v606 = vadd.f32 %v605, %v591
      %v607 = vadd.f32 %v606, %v592
      %v608 = vadd.f32 %v607, %v593
      %v609 = vadd.f32 %v608, %v594
      %v610 = vadd.f32 %v609, %v595
      %v611 = vadd.f32 %v610, %v596
      %v612 = vadd.f32 %v611, %v597
      %v613 = vadd.f32 %v612, %v598
      %v614 = vadd.f32 %v613, %v599
      %v615 = vadd.f32 %v614, %v600
      %v616 = vadd.f32 %v615, %v601
      %v617 = vadd.f32 %v616, %v602
      %v618 = vadd.f32 %v617, %v603
      %v619 = vadd.f32 %v618, %v604
      %v620 = vrot.slane %v619, 4
      %v621 = vadd.f32 %v619, %v620
      %v622 = vrot.slane %v621, 2
      %v623 = vadd.f32 %v621, %v622
      %v624 = vrot.slane %v623, 1
      %v625 = vadd.f32 %v623, %v624
      %626 = vst [vmem:[#allocation14] sm:$0x1] %v625
      %v627 = vld [vmem:[#allocation3] sm:$0xff]
      %v628 = vld [vmem:[#allocation3 + $0x8] sm:$0xff]
      %v629 = vld [vmem:[#allocation3 + $0x10] sm:$0xff]
      %v630 = vld [vmem:[#allocation3 + $0x18] sm:$0xff]
      %v631 = vld [vmem:[#allocation3 + $0x20] sm:$0xff]
      %v632 = vld [vmem:[#allocation3 + $0x28] sm:$0xff]
      %v633 = vld [vmem:[#allocation3 + $0x30] sm:$0xff]
      %v634 = vld [vmem:[#allocation3 + $0x38] sm:$0xff]
      %v635 = vld [vmem:[#allocation3 + $0x40] sm:$0xff]
      %v636 = vld [vmem:[#allocation3 + $0x48] sm:$0xff]
      %v637 = vld [vmem:[#allocation3 + $0x50] sm:$0xff]
      %v638 = vld [vmem:[#allocation3 + $0x58] sm:$0xff]
      %v639 = vld [vmem:[#allocation3 + $0x60] sm:$0xff]
      %v640 = vld [vmem:[#allocation3 + $0x68] sm:$0xff]
      %v641 = vld [vmem:[#allocation3 + $0x70] sm:$0xff]
      %v642 = vld [vmem:[#allocation3 + $0x78] sm:$0xff]
      %643 = vst [vmem:[#allocation11] sm:$0xff] %v627
      %644 = vst [vmem:[#allocation11 + $0x8] sm:$0xff] %v628
      %645 = vst [vmem:[#allocation11 + $0x10] sm:$0xff] %v629
      %646 = vst [vmem:[#allocation11 + $0x18] sm:$0xff] %v630
      %647 = vst [vmem:[#allocation11 + $0x20] sm:$0xff] %v631
      %648 = vst [vmem:[#allocation11 + $0x28] sm:$0xff] %v632
      %649 = vst [vmem:[#allocation11 + $0x30] sm:$0xff] %v633
      %650 = vst [vmem:[#allocation11 + $0x38] sm:$0xff] %v634
      %651 = vst [vmem:[#allocation11 + $0x40] sm:$0xff] %v635
      %652 = vst [vmem:[#allocation11 + $0x48] sm:$0xff] %v636
      %653 = vst [vmem:[#allocation11 + $0x50] sm:$0xff] %v637
      %654 = vst [vmem:[#allocation11 + $0x58] sm:$0xff] %v638
      %655 = vst [vmem:[#allocation11 + $0x60] sm:$0xff] %v639
      %656 = vst [vmem:[#allocation11 + $0x68] sm:$0xff] %v640
      %657 = vst [vmem:[#allocation11 + $0x70] sm:$0xff] %v641
      %658 = vst [vmem:[#allocation11 + $0x78] sm:$0xff] %v642
    $region33: #{network_block_forward.6} parent=1 // pred_fallthru
      _
    // Predicated region
    $region34: #{network_block_forward.6} parent=1 // pred_check
      _
    $region35: #{network_block_forward.6} parent=1 // pred_check_branch
      %660 = sbr.rel (0) target = $region37
    $region36: #{network_block_forward.6} parent=1 // pred_region
      %s662 = ssub.s32 2048, 2048
      %663 = vsyncadd [#allocation6], %s662
      %s664 = sshll.u32 [#allocation10], 4
      %s665 = int_to_ptr.vmem [resolvable:$true] %s664
      %670 = dma.vmem_to_hbm [thread:$0]  %s665, 2048, %s3, [#allocation6], 128, 128, 8
    $region37: #{network_block_forward.6} parent=1 // pred_fallthru
      _
    // Predicated region
    $region38: #{network_block_forward.6} parent=1 // pred_check
      _
    $region39: #{network_block_forward.6} parent=1 // pred_check_branch
      %672 = sbr.rel (0) target = $region41
    $region40: #{network_block_forward.6} parent=1 // pred_region
      %s674 = ssub.s32 2048, 2048
      %675 = vsyncadd [#allocation12], %s674
      %s676 = sshll.u32 [#allocation11], 4
      %s677 = int_to_ptr.vmem [resolvable:$true] %s676
      %682 = dma.vmem_to_hbm [thread:$0]  %s677, 2048, %s4, [#allocation12], 128, 128, 8
    $region41: #{network_block_forward.6} parent=1 // pred_fallthru
      _
    // Predicated region
    $region42: #{network_block_forward.6} parent=1 // pred_check
      _
    $region43: #{network_block_forward.6} parent=1 // pred_check_branch
      %684 = sbr.rel (0) target = $region45
    $region44: #{network_block_forward.6} parent=1 // pred_region
      %s686 = ssub.s32 16, 16
      %687 = vsyncadd [#allocation12], %s686
      %s689 = sshll.u32 [#allocation13], 4
      %s690 = int_to_ptr.vmem [resolvable:$true] %s689
      %692 = dma.vmem_to_hbm [thread:$0]  %s690, 16, %s5, [#allocation12]
    $region45: #{network_block_forward.6} parent=1 // pred_fallthru
      _
    // Predicated region
    $region46: #{network_block_forward.6} parent=1 // pred_check
      _
    $region47: #{network_block_forward.6} parent=1 // pred_check_branch
      %694 = sbr.rel (0) target = $region49
    $region48: #{network_block_forward.6} parent=1 // pred_region
      %s696 = ssub.s32 16, 16
      %697 = vsyncadd [#allocation15], %s696
      %s699 = sshll.u32 [#allocation14], 4
      %s700 = int_to_ptr.vmem [resolvable:$true] %s699
      %702 = dma.vmem_to_hbm [thread:$0]  %s700, 16, %s6, [#allocation15]
    $region49: #{network_block_forward.6} parent=1 // pred_fallthru
      _
    // Predicated region
    $region50: #{network_block_forward.6} parent=1 // pred_check
      _
    $region51: #{network_block_forward.6} parent=1 // pred_check_branch
      %704 = sbr.rel (0) target = $region53
    $region52: #{network_block_forward.6} parent=1 // pred_region
      %705 = dma.done [#allocation6], 2048
    $region53: #{network_block_forward.6} parent=1 // pred_fallthru
      _
    // Predicated region
    $region54: #{network_block_forward.6} parent=1 // pred_check
      _
    $region55: #{network_block_forward.6} parent=1 // pred_check_branch
      %707 = sbr.rel (0) target = $region57
    $region56: #{network_block_forward.6} parent=1 // pred_region
      %708 = dma.done [#allocation12], 2048
    $region57: #{network_block_forward.6} parent=1 // pred_fallthru
      _
    // Predicated region
    $region58: #{network_block_forward.6} parent=1 // pred_check
      _
    $region59: #{network_block_forward.6} parent=1 // pred_check_branch
      %710 = sbr.rel (0) target = $region61
    $region60: #{network_block_forward.6} parent=1 // pred_region
      %711 = dma.done [#allocation12], 16
    $region61: #{network_block_forward.6} parent=1 // pred_fallthru
      _
    // Predicated region
    $region62: #{network_block_forward.6} parent=1 // pred_check
      _
    $region63: #{network_block_forward.6} parent=1 // pred_check_branch
      %713 = sbr.rel (0) target = $region65
    $region64: #{network_block_forward.6} parent=1 // pred_region
      %714 = dma.done [#allocation15], 16
    $region65: #{network_block_forward.6} parent=1 // pred_fallthru
      _
    %715 = vsyncpa [#allocation5], 1
    %716 = vsyncpa [#allocation8], 1
    %717 = vsyncpa [#allocation6], 1
    %718 = vsyncpa [#allocation12], 1
    %719 = vsyncpa [#allocation15], 1

// kernel: network_block_forward.8
$region0: #{network_block_forward.8}
  #allocation0 [shape = 'u32[]', space=smem, size = 0x4, offset = 0x4, fixed_abs, tag = 'smem constant byte address 0x4 - core index']
  #allocation1 [shape = 'u32[144,128]{1,0:T(1,128)}', space=vmem, size = 0x12000, scoped, tag = 'internal scratch']
  #allocation2 [shape = 'f32[128,128]{1,0:T(8,128)}', space=vmem, size = 0x10000, scoped, tag = 'scratch operand']
  %s0 = inlined_call_operand.hbm [shape: f32[128,128], index: 0, kind: input, shape index: {}]
  %s1 = inlined_call_operand.hbm [shape: f32[128,128], index: 1, kind: input, shape index: {}]
  %s2 = inlined_call_operand.hbm [shape: f32[128,128], index: 2, kind: output, shape index: {0}]
  %s3 = inlined_call_operand.hbm [shape: f32[1,1,128], index: 3, kind: output, shape index: {1}]
  %s4 = inlined_call_operand.hbm [shape: f32[1,1,128], index: 4, kind: output, shape index: {2}]
  %5 = xla_tuple %s2, %s3, %s4
  %s6 = sld [smem:[#allocation0]]
  $region50: #{network_block_forward.8} parent=0
    _
  %s8 = ssub.s32 1, %s6
  %s9 = scalar_select 0, %s8, %s6
  $region1: #{network_block_forward.8} parent=0
    #allocation3 [shape = 'u8[65536]{0}', space=vmem, size = 0x10000, scoped, tag = 'input window, operand 0, single buffered']
    #allocation4 [shape = 's32[1]{0}', space=sflag, size = 0x4, scoped, tag = 'scoped memory for network_block_forward.8']
    #allocation5 [shape = 's32[1]{0}', space=sflag, size = 0x4, scoped, tag = 'scoped memory for network_block_forward.8']
    #allocation6 [shape = 'u8[65536]{0}', space=vmem, size = 0x10000, scoped, tag = 'input window, operand 1, single buffered']
    #allocation7 [shape = 's32[1]{0}', space=sflag, size = 0x4, scoped, tag = 'scoped memory for network_block_forward.8']
    #allocation8 [shape = 'u8[65536]{0}', space=vmem, size = 0x10000, scoped, tag = 'output window, operand 0, single buffered']
    #allocation9 [shape = 'u8[512]{0}', space=vmem, size = 0x400, scoped, tag = 'output window, operand 1, single buffered']
    #allocation10 [shape = 's32[1]{0}', space=sflag, size = 0x4, scoped, tag = 'scoped memory for network_block_forward.8']
    #allocation11 [shape = 'u8[512]{0}', space=vmem, size = 0x400, scoped, tag = 'output window, operand 2, single buffered']
    %10 = vsyncpa [#allocation4], 0
    %11 = vsyncpa [#allocation7], 0
    %12 = vsyncpa [#allocation5], 0
    %13 = vsyncpa [#allocation10], 0
    // Predicated region
    $region2: #{network_block_forward.8} parent=1 // pred_check
      _
    $region3: #{network_block_forward.8} parent=1 // pred_check_branch
      %15 = sbr.rel (0) target = $region5
    $region4: #{network_block_forward.8} parent=1 // pred_region
      %s17 = ssub.s32 2048, 2048
      %18 = vsyncadd [#allocation4], %s17
      %s19 = sshll.u32 [#allocation3], 4
      %s20 = int_to_ptr.vmem [resolvable:$true] %s19
      %25 = dma.hbm_to_vmem [thread:$0]  %s0, 2048, %s20, [#allocation4], 128, 128, 8
    $region5: #{network_block_forward.8} parent=1 // pred_fallthru
      _
    // Predicated region
    $region6: #{network_block_forward.8} parent=1 // pred_check
      _
    $region7: #{network_block_forward.8} parent=1 // pred_check_branch
      %27 = sbr.rel (0) target = $region9
    $region8: #{network_block_forward.8} parent=1 // pred_region
      %s29 = ssub.s32 2048, 2048
      %30 = vsyncadd [#allocation7], %s29
      %s31 = sshll.u32 [#allocation6], 4
      %s32 = int_to_ptr.vmem [resolvable:$true] %s31
      %37 = dma.hbm_to_vmem [thread:$0]  %s1, 2048, %s32, [#allocation7], 128, 128, 8
    $region9: #{network_block_forward.8} parent=1 // pred_fallthru
      _
    // Predicated region
    $region10: #{network_block_forward.8} parent=1 // pred_check
      _
    $region11: #{network_block_forward.8} parent=1 // pred_check_branch
      %39 = sbr.rel (0) target = $region13
    $region12: #{network_block_forward.8} parent=1 // pred_region
      %40 = dma.done [#allocation4], 2048
    $region13: #{network_block_forward.8} parent=1 // pred_fallthru
      _
    // Predicated region
    $region14: #{network_block_forward.8} parent=1 // pred_check
      _
    $region15: #{network_block_forward.8} parent=1 // pred_check_branch
      %42 = sbr.rel (0) target = $region17
    $region16: #{network_block_forward.8} parent=1 // pred_region
      %43 = dma.done [#allocation7], 2048
    $region17: #{network_block_forward.8} parent=1 // pred_fallthru
      _
    %p44 = scmp.eq.s32.totalorder 0, 0
    // Predicated region
    $region18: #{network_block_forward.8} parent=1 // pred_check
      %p45 = pneg %p44
    $region19: #{network_block_forward.8} parent=1 // pred_check_branch
      %47 = sbr.rel (%p45) target = $region21
    $region20: #{network_block_forward.8} parent=1 // pred_region
      %48 = vst [vmem:[#allocation2] sm:$0xff] 0.0
      %49 = vst [vmem:[#allocation2 + $0x8] sm:$0xff] 0.0
      %50 = vst [vmem:[#allocation2 + $0x10] sm:$0xff] 0.0
      %51 = vst [vmem:[#allocation2 + $0x18] sm:$0xff] 0.0
      %52 = vst [vmem:[#allocation2 + $0x20] sm:$0xff] 0.0
      %53 = vst [vmem:[#allocation2 + $0x28] sm:$0xff] 0.0
      %54 = vst [vmem:[#allocation2 + $0x30] sm:$0xff] 0.0
      %55 = vst [vmem:[#allocation2 + $0x38] sm:$0xff] 0.0
      %56 = vst [vmem:[#allocation2 + $0x40] sm:$0xff] 0.0
      %57 = vst [vmem:[#allocation2 + $0x48] sm:$0xff] 0.0
      %58 = vst [vmem:[#allocation2 + $0x50] sm:$0xff] 0.0
      %59 = vst [vmem:[#allocation2 + $0x58] sm:$0xff] 0.0
      %60 = vst [vmem:[#allocation2 + $0x60] sm:$0xff] 0.0
      %61 = vst [vmem:[#allocation2 + $0x68] sm:$0xff] 0.0
      %62 = vst [vmem:[#allocation2 + $0x70] sm:$0xff] 0.0
      %63 = vst [vmem:[#allocation2 + $0x78] sm:$0xff] 0.0
    $region21: #{network_block_forward.8} parent=1 // pred_fallthru
      _
    %v64 = vld [vmem:[#allocation3] sm:$0xff]
    %v65 = vld [vmem:[#allocation3 + $0x8] sm:$0xff]
    %v66 = vld [vmem:[#allocation3 + $0x10] sm:$0xff]
    %v67 = vld [vmem:[#allocation3 + $0x18] sm:$0xff]
    %v68 = vld [vmem:[#allocation3 + $0x20] sm:$0xff]
    %v69 = vld [vmem:[#allocation3 + $0x28] sm:$0xff]
    %v70 = vld [vmem:[#allocation3 + $0x30] sm:$0xff]
    %v71 = vld [vmem:[#allocation3 + $0x38] sm:$0xff]
    %v72 = vld [vmem:[#allocation3 + $0x40] sm:$0xff]
    %v73 = vld [vmem:[#allocation3 + $0x48] sm:$0xff]
    %v74 = vld [vmem:[#allocation3 + $0x50] sm:$0xff]
    %v75 = vld [vmem:[#allocation3 + $0x58] sm:$0xff]
    %v76 = vld [vmem:[#allocation3 + $0x60] sm:$0xff]
    %v77 = vld [vmem:[#allocation3 + $0x68] sm:$0xff]
    %v78 = vld [vmem:[#allocation3 + $0x70] sm:$0xff]
    %v79 = vld [vmem:[#allocation3 + $0x78] sm:$0xff]
    %v80 = vld [vmem:[#allocation2] sm:$0xff]
    %v81 = vld [vmem:[#allocation2 + $0x8] sm:$0xff]
    %v82 = vld [vmem:[#allocation2 + $0x10] sm:$0xff]
    %v83 = vld [vmem:[#allocation2 + $0x18] sm:$0xff]
    %v84 = vld [vmem:[#allocation2 + $0x20] sm:$0xff]
    %v85 = vld [vmem:[#allocation2 + $0x28] sm:$0xff]
    %v86 = vld [vmem:[#allocation2 + $0x30] sm:$0xff]
    %v87 = vld [vmem:[#allocation2 + $0x38] sm:$0xff]
    %v88 = vld [vmem:[#allocation2 + $0x40] sm:$0xff]
    %v89 = vld [vmem:[#allocation2 + $0x48] sm:$0xff]
    %v90 = vld [vmem:[#allocation2 + $0x50] sm:$0xff]
    %v91 = vld [vmem:[#allocation2 + $0x58] sm:$0xff]
    %v92 = vld [vmem:[#allocation2 + $0x60] sm:$0xff]
    %v93 = vld [vmem:[#allocation2 + $0x68] sm:$0xff]
    %v94 = vld [vmem:[#allocation2 + $0x70] sm:$0xff]
    %v95 = vld [vmem:[#allocation2 + $0x78] sm:$0xff]
    %v96 = vld [vmem:[#allocation6] sm:$0xff]
    %v97 = vld [vmem:[#allocation6 + $0x8] sm:$0xff]
    %v98 = vld [vmem:[#allocation6 + $0x10] sm:$0xff]
    %v99 = vld [vmem:[#allocation6 + $0x18] sm:$0xff]
    %v100 = vld [vmem:[#allocation6 + $0x20] sm:$0xff]
    %v101 = vld [vmem:[#allocation6 + $0x28] sm:$0xff]
    %v102 = vld [vmem:[#allocation6 + $0x30] sm:$0xff]
    %v103 = vld [vmem:[#allocation6 + $0x38] sm:$0xff]
    %v104 = vld [vmem:[#allocation6 + $0x40] sm:$0xff]
    %v105 = vld [vmem:[#allocation6 + $0x48] sm:$0xff]
    %v106 = vld [vmem:[#allocation6 + $0x50] sm:$0xff]
    %v107 = vld [vmem:[#allocation6 + $0x58] sm:$0xff]
    %v108 = vld [vmem:[#allocation6 + $0x60] sm:$0xff]
    %v109 = vld [vmem:[#allocation6 + $0x68] sm:$0xff]
    %v110 = vld [vmem:[#allocation6 + $0x70] sm:$0xff]
    %v111 = vld [vmem:[#allocation6 + $0x78] sm:$0xff]
    %112 = vmatprep.subr.mxu0 0.0
    %113 = vmatpush1.msra.mxu0 %v96
    %114 = vmatprep.subr.mxu0 0.0
    %115 = vmatpush1.msra.mxu0 %v97
    %116 = vmatprep.subr.mxu0 0.0
    %117 = vmatpush1.msra.mxu0 %v98
    %118 = vmatprep.subr.mxu0 0.0
    %119 = vmatpush1.msra.mxu0 %v99
    %120 = vmatprep.subr.mxu0 0.0
    %121 = vmatpush1.msra.mxu0 %v100
    %122 = vmatprep.subr.mxu0 0.0
    %123 = vmatpush1.msra.mxu0 %v101
    %124 = vmatprep.subr.mxu0 0.0
    %125 = vmatpush1.msra.mxu0 %v102
    %126 = vmatprep.subr.mxu0 0.0
    %127 = vmatpush1.msra.mxu0 %v103
    %128 = vmatprep.subr.mxu0 0.0
    %129 = vmatpush1.msra.mxu0 %v104
    %130 = vmatprep.subr.mxu0 0.0
    %131 = vmatpush1.msra.mxu0 %v105
    %132 = vmatprep.subr.mxu0 0.0
    %133 = vmatpush1.msra.mxu0 %v106
    %134 = vmatprep.subr.mxu0 0.0
    %135 = vmatpush1.msra.mxu0 %v107
    %136 = vmatprep.subr.mxu0 0.0
    %137 = vmatpush1.msra.mxu0 %v108
    %138 = vmatprep.subr.mxu0 0.0
    %139 = vmatpush1.msra.mxu0 %v109
    %140 = vmatprep.subr.mxu0 0.0
    %141 = vmatpush1.msra.mxu0 %v110
    %142 = vmatprep.subr.mxu0 0.0
    %143 = vmatpush1.msra.mxu0 %v111
    %144 = vmatprep.subr.mxu0 0.0
    %145 = vmatpush1.msra.mxu0 0.0
    %146 = vmatprep.subr.mxu0 0.0
    %147 = vmatpush1.msra.mxu0 0.0
    %148 = vmatprep.subr.mxu0 0.0
    %149 = vmatpush1.msra.mxu0 0.0
    %150 = vmatprep.subr.mxu0 0.0
    %151 = vmatpush1.msra.mxu0 0.0
    %152 = vmatprep.subr.mxu0 0.0
    %153 = vmatpush1.msra.mxu0 0.0
    %154 = vmatprep.subr.mxu0 0.0
    %155 = vmatpush1.msra.mxu0 0.0
    %156 = vmatprep.subr.mxu0 0.0
    %157 = vmatpush1.msra.mxu0 0.0
    %158 = vmatprep.subr.mxu0 0.0
    %159 = vmatpush1.msra.mxu0 0.0
    %160 = vmatprep.subr.mxu0 0.0
    %161 = vmatpush1.msra.mxu0 0.0
    %162 = vmatprep.subr.mxu0 0.0
    %163 = vmatpush1.msra.mxu0 0.0
    %164 = vmatprep.subr.mxu0 0.0
    %165 = vmatpush1.msra.mxu0 0.0
    %166 = vmatprep.subr.mxu0 0.0
    %167 = vmatpush1.msra.mxu0 0.0
    %168 = vmatprep.subr.mxu0 0.0
    %169 = vmatpush1.msra.mxu0 0.0
    %170 = vmatprep.subr.mxu0 0.0
    %171 = vmatpush1.msra.mxu0 0.0
    %172 = vmatprep.subr.mxu0 0.0
    %173 = vmatpush1.msra.mxu0 0.0
    %174 = vmatprep.subr.mxu0 0.0
    %175 = vmatpush1.msra.mxu0 0.0
    %176 = vmatprep.mubr.f32.mxu0 0.0
    %177 = vmatmul.mubr.f32.gmra.mrb[0].mxu0 %v64
    %v178 = vpop.f32.mrb[0].mxu0
    %v179 = vadd.f32 0.0, %v178
    %v180 = vpop.f32.mrb[0].mxu0
    %181 = vmatprep.mubr.f32.mxu0 0.0
    %182 = vmatmul.mubr.f32.gmra.mrb[0].mxu0 %v65
    %v183 = vpop.f32.mrb[0].mxu0
    %v184 = vadd.f32 0.0, %v183
    %v185 = vpop.f32.mrb[0].mxu0
    %186 = vmatprep.mubr.f32.mxu0 0.0
    %187 = vmatmul.mubr.f32.gmra.mrb[0].mxu0 %v66
    %v188 = vpop.f32.mrb[0].mxu0
    %v189 = vadd.f32 0.0, %v188
    %v190 = vpop.f32.mrb[0].mxu0
    %191 = vmatprep.mubr.f32.mxu0 0.0
    %192 = vmatmul.mubr.f32.gmra.mrb[0].mxu0 %v67
    %v193 = vpop.f32.mrb[0].mxu0
    %v194 = vadd.f32 0.0, %v193
    %v195 = vpop.f32.mrb[0].mxu0
    %196 = vmatprep.mubr.f32.mxu0 0.0
    %197 = vmatmul.mubr.f32.gmra.mrb[0].mxu0 %v68
    %v198 = vpop.f32.mrb[0].mxu0
    %v199 = vadd.f32 0.0, %v198
    %v200 = vpop.f32.mrb[0].mxu0
    %201 = vmatprep.mubr.f32.mxu0 0.0
    %202 = vmatmul.mubr.f32.gmra.mrb[0].mxu0 %v69
    %v203 = vpop.f32.mrb[0].mxu0
    %v204 = vadd.f32 0.0, %v203
    %v205 = vpop.f32.mrb[0].mxu0
    %206 = vmatprep.mubr.f32.mxu0 0.0
    %207 = vmatmul.mubr.f32.gmra.mrb[0].mxu0 %v70
    %v208 = vpop.f32.mrb[0].mxu0
    %v209 = vadd.f32 0.0, %v208
    %v210 = vpop.f32.mrb[0].mxu0
    %211 = vmatprep.mubr.f32.mxu0 0.0
    %212 = vmatmul.mubr.f32.gmra.mrb[0].mxu0 %v71
    %v213 = vpop.f32.mrb[0].mxu0
    %v214 = vadd.f32 0.0, %v213
    %v215 = vpop.f32.mrb[0].mxu0
    %216 = vmatprep.mubr.f32.mxu0 0.0
    %217 = vmatmul.mubr.f32.gmra.mrb[0].mxu0 %v72
    %v218 = vpop.f32.mrb[0].mxu0
    %v219 = vadd.f32 0.0, %v218
    %v220 = vpop.f32.mrb[0].mxu0
    %221 = vmatprep.mubr.f32.mxu0 0.0
    %222 = vmatmul.mubr.f32.gmra.mrb[0].mxu0 %v73
    %v223 = vpop.f32.mrb[0].mxu0
    %v224 = vadd.f32 0.0, %v223
    %v225 = vpop.f32.mrb[0].mxu0
    %226 = vmatprep.mubr.f32.mxu0 0.0
    %227 = vmatmul.mubr.f32.gmra.mrb[0].mxu0 %v74
    %v228 = vpop.f32.mrb[0].mxu0
    %v229 = vadd.f32 0.0, %v228
    %v230 = vpop.f32.mrb[0].mxu0
    %231 = vmatprep.mubr.f32.mxu0 0.0
    %232 = vmatmul.mubr.f32.gmra.mrb[0].mxu0 %v75
    %v233 = vpop.f32.mrb[0].mxu0
    %v234 = vadd.f32 0.0, %v233
    %v235 = vpop.f32.mrb[0].mxu0
    %236 = vmatprep.mubr.f32.mxu0 0.0
    %237 = vmatmul.mubr.f32.gmra.mrb[0].mxu0 %v76
    %v238 = vpop.f32.mrb[0].mxu0
    %v239 = vadd.f32 0.0, %v238
    %v240 = vpop.f32.mrb[0].mxu0
    %241 = vmatprep.mubr.f32.mxu0 0.0
    %242 = vmatmul.mubr.f32.gmra.mrb[0].mxu0 %v77
    %v243 = vpop.f32.mrb[0].mxu0
    %v244 = vadd.f32 0.0, %v243
    %v245 = vpop.f32.mrb[0].mxu0
    %246 = vmatprep.mubr.f32.mxu0 0.0
    %247 = vmatmul.mubr.f32.gmra.mrb[0].mxu0 %v78
    %v248 = vpop.f32.mrb[0].mxu0
    %v249 = vadd.f32 0.0, %v248
    %v250 = vpop.f32.mrb[0].mxu0
    %251 = vmatprep.mubr.f32.mxu0 0.0
    %252 = vmatmul.mubr.f32.gmra.mrb[0].mxu0 %v79
    %v253 = vpop.f32.mrb[0].mxu0
    %v254 = vadd.f32 0.0, %v253
    %v255 = vpop.f32.mrb[0].mxu0
    %256 = vdwg.mxu0
    %v257 = vadd.f32 %v80, %v179
    %v258 = vadd.f32 %v81, %v184
    %v259 = vadd.f32 %v82, %v189
    %v260 = vadd.f32 %v83, %v194
    %v261 = vadd.f32 %v84, %v199
    %v262 = vadd.f32 %v85, %v204
    %v263 = vadd.f32 %v86, %v209
    %v264 = vadd.f32 %v87, %v214
    %v265 = vadd.f32 %v88, %v219
    %v266 = vadd.f32 %v89, %v224
    %v267 = vadd.f32 %v90, %v229
    %v268 = vadd.f32 %v91, %v234
    %v269 = vadd.f32 %v92, %v239
    %v270 = vadd.f32 %v93, %v244
    %v271 = vadd.f32 %v94, %v249
    %v272 = vadd.f32 %v95, %v254
    %273 = vst [vmem:[#allocation2] sm:$0xff] %v257
    %274 = vst [vmem:[#allocation2 + $0x8] sm:$0xff] %v258
    %275 = vst [vmem:[#allocation2 + $0x10] sm:$0xff] %v259
    %276 = vst [vmem:[#allocation2 + $0x18] sm:$0xff] %v260
    %277 = vst [vmem:[#allocation2 + $0x20] sm:$0xff] %v261
    %278 = vst [vmem:[#allocation2 + $0x28] sm:$0xff] %v262
    %279 = vst [vmem:[#allocation2 + $0x30] sm:$0xff] %v263
    %280 = vst [vmem:[#allocation2 + $0x38] sm:$0xff] %v264
    %281 = vst [vmem:[#allocation2 + $0x40] sm:$0xff] %v265
    %282 = vst [vmem:[#allocation2 + $0x48] sm:$0xff] %v266
    %283 = vst [vmem:[#allocation2 + $0x50] sm:$0xff] %v267
    %284 = vst [vmem:[#allocation2 + $0x58] sm:$0xff] %v268
    %285 = vst [vmem:[#allocation2 + $0x60] sm:$0xff] %v269
    %286 = vst [vmem:[#allocation2 + $0x68] sm:$0xff] %v270
    %287 = vst [vmem:[#allocation2 + $0x70] sm:$0xff] %v271
    %288 = vst [vmem:[#allocation2 + $0x78] sm:$0xff] %v272
    // Predicated region
    $region22: #{network_block_forward.8} parent=1 // pred_check
      %p289 = pneg %p44
    $region23: #{network_block_forward.8} parent=1 // pred_check_branch
      %291 = sbr.rel (%p289) target = $region25
    $region24: #{network_block_forward.8} parent=1 // pred_region
      %v292 = vld [vmem:[#allocation2] sm:$0xff]
      %v293 = vld [vmem:[#allocation2 + $0x8] sm:$0xff]
      %v294 = vld [vmem:[#allocation2 + $0x10] sm:$0xff]
      %v295 = vld [vmem:[#allocation2 + $0x18] sm:$0xff]
      %v296 = vld [vmem:[#allocation2 + $0x20] sm:$0xff]
      %v297 = vld [vmem:[#allocation2 + $0x28] sm:$0xff]
      %v298 = vld [vmem:[#allocation2 + $0x30] sm:$0xff]
      %v299 = vld [vmem:[#allocation2 + $0x38] sm:$0xff]
      %v300 = vld [vmem:[#allocation2 + $0x40] sm:$0xff]
      %v301 = vld [vmem:[#allocation2 + $0x48] sm:$0xff]
      %v302 = vld [vmem:[#allocation2 + $0x50] sm:$0xff]
      %v303 = vld [vmem:[#allocation2 + $0x58] sm:$0xff]
      %v304 = vld [vmem:[#allocation2 + $0x60] sm:$0xff]
      %v305 = vld [vmem:[#allocation2 + $0x68] sm:$0xff]
      %v306 = vld [vmem:[#allocation2 + $0x70] sm:$0xff]
      %v307 = vld [vmem:[#allocation2 + $0x78] sm:$0xff]
      %308 = vst [vmem:[#allocation8] sm:$0xff] %v292
      %309 = vst [vmem:[#allocation8 + $0x8] sm:$0xff] %v293
      %310 = vst [vmem:[#allocation8 + $0x10] sm:$0xff] %v294
      %311 = vst [vmem:[#allocation8 + $0x18] sm:$0xff] %v295
      %312 = vst [vmem:[#allocation8 + $0x20] sm:$0xff] %v296
      %313 = vst [vmem:[#allocation8 + $0x28] sm:$0xff] %v297
      %314 = vst [vmem:[#allocation8 + $0x30] sm:$0xff] %v298
      %315 = vst [vmem:[#allocation8 + $0x38] sm:$0xff] %v299
      %316 = vst [vmem:[#allocation8 + $0x40] sm:$0xff] %v300
      %317 = vst [vmem:[#allocation8 + $0x48] sm:$0xff] %v301
      %318 = vst [vmem:[#allocation8 + $0x50] sm:$0xff] %v302
      %319 = vst [vmem:[#allocation8 + $0x58] sm:$0xff] %v303
      %320 = vst [vmem:[#allocation8 + $0x60] sm:$0xff] %v304
      %321 = vst [vmem:[#allocation8 + $0x68] sm:$0xff] %v305
      %322 = vst [vmem:[#allocation8 + $0x70] sm:$0xff] %v306
      %323 = vst [vmem:[#allocation8 + $0x78] sm:$0xff] %v307
      %v324 = vadd.f32 %v292, %v293
      %v325 = vadd.f32 %v324, %v294
      %v326 = vadd.f32 %v325, %v295
      %v327 = vadd.f32 %v326, %v296
      %v328 = vadd.f32 %v327, %v297
      %v329 = vadd.f32 %v328, %v298
      %v330 = vadd.f32 %v329, %v299
      %v331 = vadd.f32 %v330, %v300
      %v332 = vadd.f32 %v331, %v301
      %v333 = vadd.f32 %v332, %v302
      %v334 = vadd.f32 %v333, %v303
      %v335 = vadd.f32 %v334, %v304
      %v336 = vadd.f32 %v335, %v305
      %v337 = vadd.f32 %v336, %v306
      %v338 = vadd.f32 %v337, %v307
      %v339 = vrot.slane %v338, 4
      %v340 = vadd.f32 %v338, %v339
      %v341 = vrot.slane %v340, 2
      %v342 = vadd.f32 %v340, %v341
      %v343 = vrot.slane %v342, 1
      %v344 = vadd.f32 %v342, %v343
      %345 = vst [vmem:[#allocation9] sm:$0x1] %v344
      %v346 = vmul.f32 %v292, %v292
      %v347 = vmul.f32 %v293, %v293
      %v348 = vmul.f32 %v294, %v294
      %v349 = vmul.f32 %v295, %v295
      %v350 = vmul.f32 %v296, %v296
      %v351 = vmul.f32 %v297, %v297
      %v352 = vmul.f32 %v298, %v298
      %v353 = vmul.f32 %v299, %v299
      %v354 = vmul.f32 %v300, %v300
      %v355 = vmul.f32 %v301, %v301
      %v356 = vmul.f32 %v302, %v302
      %v357 = vmul.f32 %v303, %v303
      %v358 = vmul.f32 %v304, %v304
      %v359 = vmul.f32 %v305, %v305
      %v360 = vmul.f32 %v306, %v306
      %v361 = vmul.f32 %v307, %v307
      %v362 = vadd.f32 %v346, %v347
      %v363 = vadd.f32 %v362, %v348
      %v364 = vadd.f32 %v363, %v349
      %v365 = vadd.f32 %v364, %v350
      %v366 = vadd.f32 %v365, %v351
      %v367 = vadd.f32 %v366, %v352
      %v368 = vadd.f32 %v367, %v353
      %v369 = vadd.f32 %v368, %v354
      %v370 = vadd.f32 %v369, %v355
      %v371 = vadd.f32 %v370, %v356
      %v372 = vadd.f32 %v371, %v357
      %v373 = vadd.f32 %v372, %v358
      %v374 = vadd.f32 %v373, %v359
      %v375 = vadd.f32 %v374, %v360
      %v376 = vadd.f32 %v375, %v361
      %v377 = vrot.slane %v376, 4
      %v378 = vadd.f32 %v376, %v377
      %v379 = vrot.slane %v378, 2
      %v380 = vadd.f32 %v378, %v379
      %v381 = vrot.slane %v380, 1
      %v382 = vadd.f32 %v380, %v381
      %383 = vst [vmem:[#allocation11] sm:$0x1] %v382
    $region25: #{network_block_forward.8} parent=1 // pred_fallthru
      _
    // Predicated region
    $region26: #{network_block_forward.8} parent=1 // pred_check
      _
    $region27: #{network_block_forward.8} parent=1 // pred_check_branch
      %385 = sbr.rel (0) target = $region29
    $region28: #{network_block_forward.8} parent=1 // pred_region
      %s387 = ssub.s32 2048, 2048
      %388 = vsyncadd [#allocation5], %s387
      %s389 = sshll.u32 [#allocation8], 4
      %s390 = int_to_ptr.vmem [resolvable:$true] %s389
      %395 = dma.vmem_to_hbm [thread:$0]  %s390, 2048, %s2, [#allocation5], 128, 128, 8
    $region29: #{network_block_forward.8} parent=1 // pred_fallthru
      _
    // Predicated region
    $region30: #{network_block_forward.8} parent=1 // pred_check
      _
    $region31: #{network_block_forward.8} parent=1 // pred_check_branch
      %397 = sbr.rel (0) target = $region33
    $region32: #{network_block_forward.8} parent=1 // pred_region
      %s399 = ssub.s32 16, 16
      %400 = vsyncadd [#allocation10], %s399
      %s402 = sshll.u32 [#allocation9], 4
      %s403 = int_to_ptr.vmem [resolvable:$true] %s402
      %405 = dma.vmem_to_hbm [thread:$0]  %s403, 16, %s3, [#allocation10]
    $region33: #{network_block_forward.8} parent=1 // pred_fallthru
      _
    // Predicated region
    $region34: #{network_block_forward.8} parent=1 // pred_check
      _
    $region35: #{network_block_forward.8} parent=1 // pred_check_branch
      %407 = sbr.rel (0) target = $region37
    $region36: #{network_block_forward.8} parent=1 // pred_region
      %s409 = ssub.s32 16, 16
      %410 = vsyncadd [#allocation10], %s409
      %s412 = sshll.u32 [#allocation11], 4
      %s413 = int_to_ptr.vmem [resolvable:$true] %s412
      %415 = dma.vmem_to_hbm [thread:$0]  %s413, 16, %s4, [#allocation10]
    $region37: #{network_block_forward.8} parent=1 // pred_fallthru
      _
    // Predicated region
    $region38: #{network_block_forward.8} parent=1 // pred_check
      _
    $region39: #{network_block_forward.8} parent=1 // pred_check_branch
      %417 = sbr.rel (0) target = $region41
    $region40: #{network_block_forward.8} parent=1 // pred_region
      %418 = dma.done [#allocation5], 2048
    $region41: #{network_block_forward.8} parent=1 // pred_fallthru
      _
    // Predicated region
    $region42: #{network_block_forward.8} parent=1 // pred_check
      _
    $region43: #{network_block_forward.8} parent=1 // pred_check_branch
      %420 = sbr.rel (0) target = $region45
    $region44: #{network_block_forward.8} parent=1 // pred_region
      %421 = dma.done [#allocation10], 16
    $region45: #{network_block_forward.8} parent=1 // pred_fallthru
      _
    // Predicated region
    $region46: #{network_block_forward.8} parent=1 // pred_check
      _
    $region47: #{network_block_forward.8} parent=1 // pred_check_branch
      %423 = sbr.rel (0) target = $region49
    $region48: #{network_block_forward.8} parent=1 // pred_region
      %424 = dma.done [#allocation10], 16
    $region49: #{network_block_forward.8} parent=1 // pred_fallthru
      _
    %425 = vsyncpa [#allocation4], 1
    %426 = vsyncpa [#allocation7], 1
    %427 = vsyncpa [#allocation5], 1
    %428 = vsyncpa [#allocation10], 1

</llo_original>
